<compile_context>
chip_gen: v6e
topology: v6e:2x2x1
jax: 0.10.0
libtpu: 0.0.40
codegen_flags: <defaults>
</compile_context>

<pallas_src>
import functools

import numpy as np
import jax
import jax.numpy as jnp
from jax.experimental import pallas as pl
from jax.experimental.pallas import tpu as pltpu


# -------------------------------------------------------------------------
# Host-side glue: interpolation matrices and index tables (match torch
# F.interpolate bilinear / align_corners=False / antialias=False, pytorchvideo
# UniformTemporalSubsample, torchvision CenterCropVideo, PackPathway).
# -------------------------------------------------------------------------
def _bilinear_matrix(in_size: int, out_size: int) -> np.ndarray:
    scale = in_size / out_size
    W = np.zeros((out_size, in_size), dtype=np.float32)
    for i in range(out_size):
        src = max((i + 0.5) * scale - 0.5, 0.0)
        x0 = min(int(np.floor(src)), in_size - 1)
        x1 = min(x0 + 1, in_size - 1)
        lam = src - x0
        W[i, x0] += 1.0 - lam
        W[i, x1] += lam
    return W          # every row sums to 1.0


def _uniform_temporal_indices(t_in: int, num_samples: int) -> np.ndarray:
    # UniformTemporalSubsample: linspace -> clamp -> long()
    idx = np.linspace(0, t_in - 1, num_samples)
    return np.clip(idx, 0, t_in - 1).astype(np.int32)


def _pack_pathway_indices(t_out: int, alpha: int) -> np.ndarray:
    # PackPathway: torch.linspace(0, T-1, T//alpha).long()
    return np.floor(np.linspace(0, t_out - 1, t_out // alpha)).astype(np.int32)


def _round_up(x: int, m: int) -> int:
    return ((x + m - 1) // m) * m


def _choose_tb(t_out: int, max_tb: int = 4) -> int:
    """Frames per grid step.

    Prefer the largest TB <= max_tb that divides T_out while leaving an even
    grid (so v7x can split the frame loop across its two TensorCores).
    TB <= 4 also keeps the VMEM working set comfortable on v5e.
    """
    divisors = [tb for tb in range(1, min(max_tb, t_out) + 1) if t_out % tb == 0]
    even = [tb for tb in divisors if (t_out // tb) % 2 == 0]
    if even:
        return max(even)
    return max(divisors) if divisors else 1


# -------------------------------------------------------------------------
# Pallas kernel: TB frames x C channels per grid step.
#   x_ref   : (TB*C*Hp, W_in) uint8  — TB gathered frames, H zero-padded to Hp,
#                                      (T,C,H) pre-flattened into rows on host
#   wwT_ref : (W_in, crop)   bf16    — W-interp matrix^T (center-crop folded)
#   wh_ref  : (C, crop, Hp)  bf16    — H-interp matrix, crop folded, rows
#                                      pre-scaled by 1/(255*std[c]), zero-padded
#   o_ref   : (C, TB, crop, crop) f32
#   bias    : per-channel mean[c]/std[c] (compile-time constants)
# -------------------------------------------------------------------------
def _video_kernel(x_ref, wwT_ref, wh_ref, o_ref, *, TB, C, Hp, bias, landscape):
    wwT = wwT_ref[...]                                            # (W, crop) bf16
    # u8 -> f32 -> bf16: both converts are guaranteed Mosaic lowerings
    # (a direct u8->bf16 cast would save one VPU pass but is less portable);
    # pixel values 0..255 are exactly representable in bf16.
    xb = x_ref[...].astype(jnp.float32).astype(jnp.bfloat16)      # (TB*C*Hp, W)

    if landscape:
        # Stage 1: contract the wide W axis for all TB*C frame-channels in a
        # single MXU op (M = TB*C*Hp) — one push/drain instead of TB*C.
        t1 = jnp.dot(xb, wwT, preferred_element_type=jnp.float32)  # (TB*C*Hp, crop)
        t1 = t1.astype(jnp.bfloat16)
        # Stage 2: per (channel, frame) contraction over H.  The 1/(255*std[c])
        # scale is pre-folded into wh rows, so the epilogue is one subtract.
        for c in range(C):
            wh_c = wh_ref[c]                                       # (crop, Hp) bf16
            for t in range(TB):
                rows = (t * C + c) * Hp
                y = jnp.dot(wh_c, t1[rows:rows + Hp, :],
                            preferred_element_type=jnp.float32)    # (crop, crop)
                o_ref[c, t] = y - bias[c]
    else:
        # Portrait frames (H > W): contract the tall H axis first (fewer FLOPs).
        for c in range(C):
            wh_c = wh_ref[c]                                       # (crop, Hp) bf16
            for t in range(TB):
                rows = (t * C + c) * Hp
                s1 = jnp.dot(wh_c, xb[rows:rows + Hp, :],
                             preferred_element_type=jnp.float32)   # (crop, W)
                y = jnp.dot(s1.astype(jnp.bfloat16), wwT,
                            preferred_element_type=jnp.float32)    # (crop, crop)
                o_ref[c, t] = y - bias[c]


# -------------------------------------------------------------------------
# VideoTransform forward (ApplyTransformToKey(key="video", Compose([...])))
# -------------------------------------------------------------------------
def video_transform(sample: dict, *, side_size: int, mean, std, crop_size: int,
                    num_frames: int, alpha: int) -> dict:
    frames = sample["video"]                       # (C, T_in, H_in, W_in), uint8
    C, T_in, H_in, W_in = frames.shape
    T_out = num_frames

    # UniformTemporalSubsample indices
    fidx = _uniform_temporal_indices(T_in, T_out)

    # ShortSideScale target size
    if W_in < H_in:
        new_w, new_h = side_size, int(np.floor(float(H_in) / W_in * side_size))
    else:
        new_h, new_w = side_size, int(np.floor(float(W_in) / H_in * side_size))
    Wh = _bilinear_matrix(H_in, new_h)
    Ww = _bilinear_matrix(W_in, new_w)

    # torchvision CenterCropVideo offsets: int(round((dim - crop)/2)); fold the
    # crop into the interpolation matrices.
    i0 = int(round((new_h - crop_size) / 2.0))
    j0 = int(round((new_w - crop_size) / 2.0))
    Wh_c = Wh[i0:i0 + crop_size]                                # (crop, H_in)
    Ww_c = Ww[j0:j0 + crop_size]                                # (crop, W_in)

    # Deferred normalization (valid because interp rows sum to 1):
    #   resize(x)/255 - mean)/std == resize(x) * (1/(255*std)) - mean/std
    mean_np = np.asarray(mean, np.float32)
    std_np = np.asarray(std, np.float32)
    scale = (1.0 / (255.0 * std_np)).astype(np.float32)         # (C,)
    bias = tuple(float(m_ / s_) for m_, s_ in zip(mean_np, std_np))

    # Frame blocking + tile-aligned H padding (32 covers both u8 (32,128) and
    # bf16 (16,128) native tiles, keeping every row slice layout-free).
    TB = _choose_tb(T_out)
    n_blocks = T_out // TB
    Hp = _round_up(H_in, 32)
    landscape = W_in >= H_in

    # Host pre-gather: UniformTemporalSubsample as a cheap uint8 gather, laid
    # out (T_out, C, Hp, W_in) then flattened to (T_out*C*Hp, W_in) so every
    # kernel block is one contiguous HBM region and stage 1 needs no in-kernel
    # reshape.
    x = jnp.transpose(frames[:, fidx], (1, 0, 2, 3))            # (T, C, H, W) u8
    x = jnp.pad(x, ((0, 0), (0, 0), (0, Hp - H_in), (0, 0)))    # (T, C, Hp, W)
    x2d = x.reshape(T_out * C * Hp, W_in)

    # bf16 weights; per-channel scale folded into the H-interp rows; H padding
    # columns are zero so padded pixel rows contribute nothing.
    WwT = jnp.asarray(np.ascontiguousarray(Ww_c.T), dtype=jnp.bfloat16)   # (W_in, crop)
    Wh_pad = np.zeros((crop_size, Hp), np.float32)
    Wh_pad[:, :H_in] = Wh_c
    Wh_sc = jnp.asarray(scale[:, None, None] * Wh_pad[None, :, :],
                        dtype=jnp.bfloat16)                               # (C, crop, Hp)

    kernel = functools.partial(_video_kernel, TB=TB, C=C, Hp=Hp, bias=bias,
                               landscape=landscape)

    out = pl.pallas_call(
        kernel,
        out_shape=jax.ShapeDtypeStruct((C, T_out, crop_size, crop_size), jnp.float32),
        grid_spec=pltpu.PrefetchScalarGridSpec(
            num_scalar_prefetch=0,
            grid=(n_blocks,),
            in_specs=[
                # TB frames of uint8 pixels (one contiguous HBM region / block)
                pl.BlockSpec((TB * C * Hp, W_in), lambda b: (b, 0)),
                # interpolation matrices: constant index map -> stay VMEM-resident
                pl.BlockSpec((W_in, crop_size), lambda b: (0, 0)),
                pl.BlockSpec((C, crop_size, Hp), lambda b: (0, 0, 0)),
            ],
            out_specs=pl.BlockSpec((C, TB, crop_size, crop_size),
                                   lambda b: (0, b, 0, 0)),
        ),
        compiler_params=pltpu.CompilerParams(
            # Single frame-block axis, no carried state -> parallel (v7x megacore).
            dimension_semantics=("parallel",),
            # Headroom for production-size blocks (TB=4, crop=256) on v5e's
            # 16 MiB default scoped limit; well below every chip's physical VMEM.
            vmem_limit_bytes=48 * 1024 * 1024,
        ),
    )(x2d, WwT, Wh_sc)

    # PackPathway (pure gather glue).
    # TODO(synk): fuse the slow pathway as a second kernel output; with TB
    # frames per grid step this needs a dummy-slot slow-index out_spec scheme,
    # so it is kept as a small post-kernel gather for now.
    slow_idx = _pack_pathway_indices(T_out, alpha)
    slow_pathway = out[:, slow_idx]
    fast_pathway = out
    return {**sample, "video": [slow_pathway, fast_pathway]}


# -------------------------------------------------------------------------
# Pure-JAX f32 reference (same math, no Pallas) for the correctness check.
# -------------------------------------------------------------------------
def _reference(frames, *, side_size, mean, std, crop_size, num_frames, alpha):
    C, T_in, H_in, W_in = frames.shape
    fidx = _uniform_temporal_indices(T_in, num_frames)
    x = frames[:, fidx].astype(jnp.float32) / 255.0
    m = jnp.asarray(mean, jnp.float32)[:, None, None, None]
    s = jnp.asarray(std, jnp.float32)[:, None, None, None]
    x = (x - m) / s
    if W_in < H_in:
        new_w, new_h = side_size, int(np.floor(float(H_in) / W_in * side_size))
    else:
        new_h, new_w = side_size, int(np.floor(float(W_in) / H_in * side_size))
    Wh = jnp.asarray(_bilinear_matrix(H_in, new_h))
    Ww = jnp.asarray(_bilinear_matrix(W_in, new_w))
    y = jnp.einsum("ah,cthw,bw->ctab", Wh, x, Ww)
    i0 = int(round((new_h - crop_size) / 2.0))
    j0 = int(round((new_w - crop_size) / 2.0))
    y = y[:, :, i0:i0 + crop_size, j0:j0 + crop_size]
    sidx = _pack_pathway_indices(num_frames, alpha)
    return [y[:, sidx], y]


if __name__ == "__main__":
    # Small-shape config consistent with the module (defaults scaled down).
    cfg = dict(side_size=16, mean=[0.45, 0.45, 0.45], std=[0.225, 0.225, 0.225],
               crop_size=16, num_frames=8, alpha=4)

    key = jax.random.PRNGKey(0)
    # frames: (C=3, T=16, H=20, W=30) uint8, like decoded video.
    frames = jax.random.randint(key, (3, 16, 20, 30), 0, 256,
                                dtype=jnp.int32).astype(jnp.uint8)

    result = video_transform({"video": frames}, **cfg)
    slow, fast = result["video"]
    slow, fast = jax.block_until_ready(slow), jax.block_until_ready(fast)

    ref_slow, ref_fast = _reference(frames, **cfg)
    assert slow.shape == ref_slow.shape == (3, 2, 16, 16)
    assert fast.shape == ref_fast.shape == (3, 8, 16, 16)
    # Tolerance relaxed vs the f32 reference: the kernel uses bf16 MXU operands
    # (pixels exact; interp weights + stage-1 intermediate quantized to bf16),
    # worst-case ~1e-2 absolute error on a ~4-unit output range.
    np.testing.assert_allclose(np.asarray(fast), np.asarray(ref_fast), rtol=5e-2, atol=5e-2)
    np.testing.assert_allclose(np.asarray(slow), np.asarray(ref_slow), rtol=5e-2, atol=5e-2)

    print("KERNEL_OK")
</pallas_src>

<mosaic_0001>
module attributes {stable_mosaic.version = 11 : i64} {
  func.func @_video_kernel(%arg0: i32, %arg1: memref<384x30xi8, #tpu.memory_space<vmem>>, %arg2: memref<30x16xbf16, #tpu.memory_space<vmem>>, %arg3: memref<3x16x32xbf16, #tpu.memory_space<vmem>>, %arg4: memref<3x4x16x16xf32, #tpu.memory_space<vmem>>) attributes {dimension_semantics = [#tpu.dimension_semantics<parallel>], iteration_bounds = array<i64: 2>, scalar_prefetch = 0 : i64, scratch_operands = 0 : i64, tpu.core_type = #tpu.core_type<tc>, window_params = [{transform_indices = @transform_0, window_bounds = array<i64: 384, 30>}, {pipeline_mode = #tpu.pipeline_mode<synchronous>, transform_indices = @transform_1, window_bounds = array<i64: 30, 16>}, {pipeline_mode = #tpu.pipeline_mode<synchronous>, transform_indices = @transform_2, window_bounds = array<i64: 3, 16, 32>}, {transform_indices = @transform_3, window_bounds = array<i64: 3, 4, 16, 16>}]} {
    %c0 = arith.constant 0 : index
    %c0_0 = arith.constant 0 : index
    %0 = vector.load %arg2[%c0, %c0_0] : memref<30x16xbf16, #tpu.memory_space<vmem>>, vector<30x16xbf16>
    %c0_1 = arith.constant 0 : index
    %c0_2 = arith.constant 0 : index
    %1 = vector.load %arg1[%c0_1, %c0_2] : memref<384x30xi8, #tpu.memory_space<vmem>>, vector<384x30xi8>
    %2 = arith.uitofp %1 : vector<384x30xi8> to vector<384x30xf32>
    %3 = arith.truncf %2 : vector<384x30xf32> to vector<384x30xbf16>
    %cst = arith.constant dense<0.000000e+00> : vector<384x16xf32>
    %4 = tpu.matmul %3, %0, %cst {dimension_numbers = #tpu.dot_dimension_numbers<[1], [0], [0], [1], [0, 0, 1, 1], [], []>} : vector<384x30xbf16>, vector<30x16xbf16>, vector<384x16xf32> -> vector<384x16xf32>
    %5 = arith.truncf %4 : vector<384x16xf32> to vector<384x16xbf16>
    %c0_3 = arith.constant 0 : index
    %c0_4 = arith.constant 0 : index
    %c0_5 = arith.constant 0 : index
    %6 = vector.load %arg3[%c0_3, %c0_4, %c0_5] : memref<3x16x32xbf16, #tpu.memory_space<vmem>>, vector<1x16x32xbf16>
    %7 = vector.shape_cast %6 : vector<1x16x32xbf16> to vector<16x32xbf16>
    %8 = vector.extract_strided_slice %5 {offsets = [0, 0], sizes = [32, 16], strides = [1, 1]} : vector<384x16xbf16> to vector<32x16xbf16>
    %cst_6 = arith.constant dense<0.000000e+00> : vector<16x16xf32>
    %9 = tpu.matmul %7, %8, %cst_6 {dimension_numbers = #tpu.dot_dimension_numbers<[1], [0], [0], [1], [0, 0, 1, 1], [], []>} : vector<16x32xbf16>, vector<32x16xbf16>, vector<16x16xf32> -> vector<16x16xf32>
    %cst_7 = arith.constant 2.000000e+00 : f32
    %10 = vector.broadcast %cst_7 : f32 to vector<16x16xf32>
    %11 = arith.subf %9, %10 : vector<16x16xf32>
    %c0_8 = arith.constant 0 : index
    %c0_9 = arith.constant 0 : index
    %c0_10 = arith.constant 0 : index
    %c0_11 = arith.constant 0 : index
    %12 = vector.load %arg4[%c0_8, %c0_9, %c0_10, %c0_11] : memref<3x4x16x16xf32, #tpu.memory_space<vmem>>, vector<1x1x16x16xf32>
    %13 = vector.shape_cast %12 : vector<1x1x16x16xf32> to vector<16x16xf32>
    %14 = vector.shape_cast %11 : vector<16x16xf32> to vector<1x1x16x16xf32>
    tpu.vector_store %arg4[%c0_8, %c0_9, %c0_10, %c0_11], %14 {strides = array<i32>} : memref<3x4x16x16xf32, #tpu.memory_space<vmem>>, vector<1x1x16x16xf32>,
    %15 = vector.extract_strided_slice %5 {offsets = [96, 0], sizes = [32, 16], strides = [1, 1]} : vector<384x16xbf16> to vector<32x16xbf16>
    %cst_12 = arith.constant dense<0.000000e+00> : vector<16x16xf32>
    %16 = tpu.matmul %7, %15, %cst_12 {dimension_numbers = #tpu.dot_dimension_numbers<[1], [0], [0], [1], [0, 0, 1, 1], [], []>} : vector<16x32xbf16>, vector<32x16xbf16>, vector<16x16xf32> -> vector<16x16xf32>
    %cst_13 = arith.constant 2.000000e+00 : f32
    %17 = vector.broadcast %cst_13 : f32 to vector<16x16xf32>
    %18 = arith.subf %16, %17 : vector<16x16xf32>
    %c0_14 = arith.constant 0 : index
    %c1 = arith.constant 1 : index
    %c0_15 = arith.constant 0 : index
    %c0_16 = arith.constant 0 : index
    %19 = vector.load %arg4[%c0_14, %c1, %c0_15, %c0_16] : memref<3x4x16x16xf32, #tpu.memory_space<vmem>>, vector<1x1x16x16xf32>
    %20 = vector.shape_cast %19 : vector<1x1x16x16xf32> to vector<16x16xf32>
    %21 = vector.shape_cast %18 : vector<16x16xf32> to vector<1x1x16x16xf32>
    tpu.vector_store %arg4[%c0_14, %c1, %c0_15, %c0_16], %21 {strides = array<i32>} : memref<3x4x16x16xf32, #tpu.memory_space<vmem>>, vector<1x1x16x16xf32>,
    %22 = vector.extract_strided_slice %5 {offsets = [192, 0], sizes = [32, 16], strides = [1, 1]} : vector<384x16xbf16> to vector<32x16xbf16>
    %cst_17 = arith.constant dense<0.000000e+00> : vector<16x16xf32>
    %23 = tpu.matmul %7, %22, %cst_17 {dimension_numbers = #tpu.dot_dimension_numbers<[1], [0], [0], [1], [0, 0, 1, 1], [], []>} : vector<16x32xbf16>, vector<32x16xbf16>, vector<16x16xf32> -> vector<16x16xf32>
    %cst_18 = arith.constant 2.000000e+00 : f32
    %24 = vector.broadcast %cst_18 : f32 to vector<16x16xf32>
    %25 = arith.subf %23, %24 : vector<16x16xf32>
    %c0_19 = arith.constant 0 : index
    %c2 = arith.constant 2 : index
    %c0_20 = arith.constant 0 : index
    %c0_21 = arith.constant 0 : index
    %26 = vector.load %arg4[%c0_19, %c2, %c0_20, %c0_21] : memref<3x4x16x16xf32, #tpu.memory_space<vmem>>, vector<1x1x16x16xf32>
    %27 = vector.shape_cast %26 : vector<1x1x16x16xf32> to vector<16x16xf32>
    %28 = vector.shape_cast %25 : vector<16x16xf32> to vector<1x1x16x16xf32>
    tpu.vector_store %arg4[%c0_19, %c2, %c0_20, %c0_21], %28 {strides = array<i32>} : memref<3x4x16x16xf32, #tpu.memory_space<vmem>>, vector<1x1x16x16xf32>,
    %29 = vector.extract_strided_slice %5 {offsets = [288, 0], sizes = [32, 16], strides = [1, 1]} : vector<384x16xbf16> to vector<32x16xbf16>
    %cst_22 = arith.constant dense<0.000000e+00> : vector<16x16xf32>
    %30 = tpu.matmul %7, %29, %cst_22 {dimension_numbers = #tpu.dot_dimension_numbers<[1], [0], [0], [1], [0, 0, 1, 1], [], []>} : vector<16x32xbf16>, vector<32x16xbf16>, vector<16x16xf32> -> vector<16x16xf32>
    %cst_23 = arith.constant 2.000000e+00 : f32
    %31 = vector.broadcast %cst_23 : f32 to vector<16x16xf32>
    %32 = arith.subf %30, %31 : vector<16x16xf32>
    %c0_24 = arith.constant 0 : index
    %c3 = arith.constant 3 : index
    %c0_25 = arith.constant 0 : index
    %c0_26 = arith.constant 0 : index
    %33 = vector.load %arg4[%c0_24, %c3, %c0_25, %c0_26] : memref<3x4x16x16xf32, #tpu.memory_space<vmem>>, vector<1x1x16x16xf32>
    %34 = vector.shape_cast %33 : vector<1x1x16x16xf32> to vector<16x16xf32>
    %35 = vector.shape_cast %32 : vector<16x16xf32> to vector<1x1x16x16xf32>
    tpu.vector_store %arg4[%c0_24, %c3, %c0_25, %c0_26], %35 {strides = array<i32>} : memref<3x4x16x16xf32, #tpu.memory_space<vmem>>, vector<1x1x16x16xf32>,
    %c1_27 = arith.constant 1 : index
    %c0_28 = arith.constant 0 : index
    %c0_29 = arith.constant 0 : index
    %36 = vector.load %arg3[%c1_27, %c0_28, %c0_29] : memref<3x16x32xbf16, #tpu.memory_space<vmem>>, vector<1x16x32xbf16>
    %37 = vector.shape_cast %36 : vector<1x16x32xbf16> to vector<16x32xbf16>
    %38 = vector.extract_strided_slice %5 {offsets = [32, 0], sizes = [32, 16], strides = [1, 1]} : vector<384x16xbf16> to vector<32x16xbf16>
    %cst_30 = arith.constant dense<0.000000e+00> : vector<16x16xf32>
    %39 = tpu.matmul %37, %38, %cst_30 {dimension_numbers = #tpu.dot_dimension_numbers<[1], [0], [0], [1], [0, 0, 1, 1], [], []>} : vector<16x32xbf16>, vector<32x16xbf16>, vector<16x16xf32> -> vector<16x16xf32>
    %cst_31 = arith.constant 2.000000e+00 : f32
    %40 = vector.broadcast %cst_31 : f32 to vector<16x16xf32>
    %41 = arith.subf %39, %40 : vector<16x16xf32>
    %c1_32 = arith.constant 1 : index
    %c0_33 = arith.constant 0 : index
    %c0_34 = arith.constant 0 : index
    %c0_35 = arith.constant 0 : index
    %42 = vector.load %arg4[%c1_32, %c0_33, %c0_34, %c0_35] : memref<3x4x16x16xf32, #tpu.memory_space<vmem>>, vector<1x1x16x16xf32>
    %43 = vector.shape_cast %42 : vector<1x1x16x16xf32> to vector<16x16xf32>
    %44 = vector.shape_cast %41 : vector<16x16xf32> to vector<1x1x16x16xf32>
    tpu.vector_store %arg4[%c1_32, %c0_33, %c0_34, %c0_35], %44 {strides = array<i32>} : memref<3x4x16x16xf32, #tpu.memory_space<vmem>>, vector<1x1x16x16xf32>,
    %45 = vector.extract_strided_slice %5 {offsets = [128, 0], sizes = [32, 16], strides = [1, 1]} : vector<384x16xbf16> to vector<32x16xbf16>
    %cst_36 = arith.constant dense<0.000000e+00> : vector<16x16xf32>
    %46 = tpu.matmul %37, %45, %cst_36 {dimension_numbers = #tpu.dot_dimension_numbers<[1], [0], [0], [1], [0, 0, 1, 1], [], []>} : vector<16x32xbf16>, vector<32x16xbf16>, vector<16x16xf32> -> vector<16x16xf32>
    %cst_37 = arith.constant 2.000000e+00 : f32
    %47 = vector.broadcast %cst_37 : f32 to vector<16x16xf32>
    %48 = arith.subf %46, %47 : vector<16x16xf32>
    %c1_38 = arith.constant 1 : index
    %c1_39 = arith.constant 1 : index
    %c0_40 = arith.constant 0 : index
    %c0_41 = arith.constant 0 : index
    %49 = vector.load %arg4[%c1_38, %c1_39, %c0_40, %c0_41] : memref<3x4x16x16xf32, #tpu.memory_space<vmem>>, vector<1x1x16x16xf32>
    %50 = vector.shape_cast %49 : vector<1x1x16x16xf32> to vector<16x16xf32>
    %51 = vector.shape_cast %48 : vector<16x16xf32> to vector<1x1x16x16xf32>
    tpu.vector_store %arg4[%c1_38, %c1_39, %c0_40, %c0_41], %51 {strides = array<i32>} : memref<3x4x16x16xf32, #tpu.memory_space<vmem>>, vector<1x1x16x16xf32>,
    %52 = vector.extract_strided_slice %5 {offsets = [224, 0], sizes = [32, 16], strides = [1, 1]} : vector<384x16xbf16> to vector<32x16xbf16>
    %cst_42 = arith.constant dense<0.000000e+00> : vector<16x16xf32>
    %53 = tpu.matmul %37, %52, %cst_42 {dimension_numbers = #tpu.dot_dimension_numbers<[1], [0], [0], [1], [0, 0, 1, 1], [], []>} : vector<16x32xbf16>, vector<32x16xbf16>, vector<16x16xf32> -> vector<16x16xf32>
    %cst_43 = arith.constant 2.000000e+00 : f32
    %54 = vector.broadcast %cst_43 : f32 to vector<16x16xf32>
    %55 = arith.subf %53, %54 : vector<16x16xf32>
    %c1_44 = arith.constant 1 : index
    %c2_45 = arith.constant 2 : index
    %c0_46 = arith.constant 0 : index
    %c0_47 = arith.constant 0 : index
    %56 = vector.load %arg4[%c1_44, %c2_45, %c0_46, %c0_47] : memref<3x4x16x16xf32, #tpu.memory_space<vmem>>, vector<1x1x16x16xf32>
    %57 = vector.shape_cast %56 : vector<1x1x16x16xf32> to vector<16x16xf32>
    %58 = vector.shape_cast %55 : vector<16x16xf32> to vector<1x1x16x16xf32>
    tpu.vector_store %arg4[%c1_44, %c2_45, %c0_46, %c0_47], %58 {strides = array<i32>} : memref<3x4x16x16xf32, #tpu.memory_space<vmem>>, vector<1x1x16x16xf32>,
    %59 = vector.extract_strided_slice %5 {offsets = [320, 0], sizes = [32, 16], strides = [1, 1]} : vector<384x16xbf16> to vector<32x16xbf16>
    %cst_48 = arith.constant dense<0.000000e+00> : vector<16x16xf32>
    %60 = tpu.matmul %37, %59, %cst_48 {dimension_numbers = #tpu.dot_dimension_numbers<[1], [0], [0], [1], [0, 0, 1, 1], [], []>} : vector<16x32xbf16>, vector<32x16xbf16>, vector<16x16xf32> -> vector<16x16xf32>
    %cst_49 = arith.constant 2.000000e+00 : f32
    %61 = vector.broadcast %cst_49 : f32 to vector<16x16xf32>
    %62 = arith.subf %60, %61 : vector<16x16xf32>
    %c1_50 = arith.constant 1 : index
    %c3_51 = arith.constant 3 : index
    %c0_52 = arith.constant 0 : index
    %c0_53 = arith.constant 0 : index
    %63 = vector.load %arg4[%c1_50, %c3_51, %c0_52, %c0_53] : memref<3x4x16x16xf32, #tpu.memory_space<vmem>>, vector<1x1x16x16xf32>
    %64 = vector.shape_cast %63 : vector<1x1x16x16xf32> to vector<16x16xf32>
    %65 = vector.shape_cast %62 : vector<16x16xf32> to vector<1x1x16x16xf32>
    tpu.vector_store %arg4[%c1_50, %c3_51, %c0_52, %c0_53], %65 {strides = array<i32>} : memref<3x4x16x16xf32, #tpu.memory_space<vmem>>, vector<1x1x16x16xf32>,
    %c2_54 = arith.constant 2 : index
    %c0_55 = arith.constant 0 : index
    %c0_56 = arith.constant 0 : index
    %66 = vector.load %arg3[%c2_54, %c0_55, %c0_56] : memref<3x16x32xbf16, #tpu.memory_space<vmem>>, vector<1x16x32xbf16>
    %67 = vector.shape_cast %66 : vector<1x16x32xbf16> to vector<16x32xbf16>
    %68 = vector.extract_strided_slice %5 {offsets = [64, 0], sizes = [32, 16], strides = [1, 1]} : vector<384x16xbf16> to vector<32x16xbf16>
    %cst_57 = arith.constant dense<0.000000e+00> : vector<16x16xf32>
    %69 = tpu.matmul %67, %68, %cst_57 {dimension_numbers = #tpu.dot_dimension_numbers<[1], [0], [0], [1], [0, 0, 1, 1], [], []>} : vector<16x32xbf16>, vector<32x16xbf16>, vector<16x16xf32> -> vector<16x16xf32>
    %cst_58 = arith.constant 2.000000e+00 : f32
    %70 = vector.broadcast %cst_58 : f32 to vector<16x16xf32>
    %71 = arith.subf %69, %70 : vector<16x16xf32>
    %c2_59 = arith.constant 2 : index
    %c0_60 = arith.constant 0 : index
    %c0_61 = arith.constant 0 : index
    %c0_62 = arith.constant 0 : index
    %72 = vector.load %arg4[%c2_59, %c0_60, %c0_61, %c0_62] : memref<3x4x16x16xf32, #tpu.memory_space<vmem>>, vector<1x1x16x16xf32>
    %73 = vector.shape_cast %72 : vector<1x1x16x16xf32> to vector<16x16xf32>
    %74 = vector.shape_cast %71 : vector<16x16xf32> to vector<1x1x16x16xf32>
    tpu.vector_store %arg4[%c2_59, %c0_60, %c0_61, %c0_62], %74 {strides = array<i32>} : memref<3x4x16x16xf32, #tpu.memory_space<vmem>>, vector<1x1x16x16xf32>,
    %75 = vector.extract_strided_slice %5 {offsets = [160, 0], sizes = [32, 16], strides = [1, 1]} : vector<384x16xbf16> to vector<32x16xbf16>
    %cst_63 = arith.constant dense<0.000000e+00> : vector<16x16xf32>
    %76 = tpu.matmul %67, %75, %cst_63 {dimension_numbers = #tpu.dot_dimension_numbers<[1], [0], [0], [1], [0, 0, 1, 1], [], []>} : vector<16x32xbf16>, vector<32x16xbf16>, vector<16x16xf32> -> vector<16x16xf32>
    %cst_64 = arith.constant 2.000000e+00 : f32
    %77 = vector.broadcast %cst_64 : f32 to vector<16x16xf32>
    %78 = arith.subf %76, %77 : vector<16x16xf32>
    %c2_65 = arith.constant 2 : index
    %c1_66 = arith.constant 1 : index
    %c0_67 = arith.constant 0 : index
    %c0_68 = arith.constant 0 : index
    %79 = vector.load %arg4[%c2_65, %c1_66, %c0_67, %c0_68] : memref<3x4x16x16xf32, #tpu.memory_space<vmem>>, vector<1x1x16x16xf32>
    %80 = vector.shape_cast %79 : vector<1x1x16x16xf32> to vector<16x16xf32>
    %81 = vector.shape_cast %78 : vector<16x16xf32> to vector<1x1x16x16xf32>
    tpu.vector_store %arg4[%c2_65, %c1_66, %c0_67, %c0_68], %81 {strides = array<i32>} : memref<3x4x16x16xf32, #tpu.memory_space<vmem>>, vector<1x1x16x16xf32>,
    %82 = vector.extract_strided_slice %5 {offsets = [256, 0], sizes = [32, 16], strides = [1, 1]} : vector<384x16xbf16> to vector<32x16xbf16>
    %cst_69 = arith.constant dense<0.000000e+00> : vector<16x16xf32>
    %83 = tpu.matmul %67, %82, %cst_69 {dimension_numbers = #tpu.dot_dimension_numbers<[1], [0], [0], [1], [0, 0, 1, 1], [], []>} : vector<16x32xbf16>, vector<32x16xbf16>, vector<16x16xf32> -> vector<16x16xf32>
    %cst_70 = arith.constant 2.000000e+00 : f32
    %84 = vector.broadcast %cst_70 : f32 to vector<16x16xf32>
    %85 = arith.subf %83, %84 : vector<16x16xf32>
    %c2_71 = arith.constant 2 : index
    %c2_72 = arith.constant 2 : index
    %c0_73 = arith.constant 0 : index
    %c0_74 = arith.constant 0 : index
    %86 = vector.load %arg4[%c2_71, %c2_72, %c0_73, %c0_74] : memref<3x4x16x16xf32, #tpu.memory_space<vmem>>, vector<1x1x16x16xf32>
    %87 = vector.shape_cast %86 : vector<1x1x16x16xf32> to vector<16x16xf32>
    %88 = vector.shape_cast %85 : vector<16x16xf32> to vector<1x1x16x16xf32>
    tpu.vector_store %arg4[%c2_71, %c2_72, %c0_73, %c0_74], %88 {strides = array<i32>} : memref<3x4x16x16xf32, #tpu.memory_space<vmem>>, vector<1x1x16x16xf32>,
    %89 = vector.extract_strided_slice %5 {offsets = [352, 0], sizes = [32, 16], strides = [1, 1]} : vector<384x16xbf16> to vector<32x16xbf16>
    %cst_75 = arith.constant dense<0.000000e+00> : vector<16x16xf32>
    %90 = tpu.matmul %67, %89, %cst_75 {dimension_numbers = #tpu.dot_dimension_numbers<[1], [0], [0], [1], [0, 0, 1, 1], [], []>} : vector<16x32xbf16>, vector<32x16xbf16>, vector<16x16xf32> -> vector<16x16xf32>
    %cst_76 = arith.constant 2.000000e+00 : f32
    %91 = vector.broadcast %cst_76 : f32 to vector<16x16xf32>
    %92 = arith.subf %90, %91 : vector<16x16xf32>
    %c2_77 = arith.constant 2 : index
    %c3_78 = arith.constant 3 : index
    %c0_79 = arith.constant 0 : index
    %c0_80 = arith.constant 0 : index
    %93 = vector.load %arg4[%c2_77, %c3_78, %c0_79, %c0_80] : memref<3x4x16x16xf32, #tpu.memory_space<vmem>>, vector<1x1x16x16xf32>
    %94 = vector.shape_cast %93 : vector<1x1x16x16xf32> to vector<16x16xf32>
    %95 = vector.shape_cast %92 : vector<16x16xf32> to vector<1x1x16x16xf32>
    tpu.vector_store %arg4[%c2_77, %c3_78, %c0_79, %c0_80], %95 {strides = array<i32>} : memref<3x4x16x16xf32, #tpu.memory_space<vmem>>, vector<1x1x16x16xf32>,
    return
  }
  func.func @transform_0(%arg0: i32) -> (i32, i32) {
    %c0_i32 = arith.constant 0 : i32
    %c0_i32_0 = arith.constant 0 : i32
    return %arg0, %c0_i32 : i32, i32
  }
  func.func @transform_1(%arg0: i32) -> (i32, i32) {
    %c0_i32 = arith.constant 0 : i32
    %c0_i32_0 = arith.constant 0 : i32
    %c0_i32_1 = arith.constant 0 : i32
    return %c0_i32, %c0_i32_0 : i32, i32
  }
  func.func @transform_2(%arg0: i32) -> (i32, i32, i32) {
    %c0_i32 = arith.constant 0 : i32
    %c0_i32_0 = arith.constant 0 : i32
    %c0_i32_1 = arith.constant 0 : i32
    %c0_i32_2 = arith.constant 0 : i32
    return %c0_i32, %c0_i32_0, %c0_i32_1 : i32, i32, i32
  }
  func.func @transform_3(%arg0: i32) -> (i32, i32, i32, i32) {
    %c0_i32 = arith.constant 0 : i32
    %c0_i32_0 = arith.constant 0 : i32
    %c0_i32_1 = arith.constant 0 : i32
    %c0_i32_2 = arith.constant 0 : i32
    return %c0_i32, %arg0, %c0_i32_0, %c0_i32_1 : i32, i32, i32, i32
  }
}

</mosaic_0001>

<llo_original>
// kernel: tpu_custom_call.1
$region0: #{tpu_custom_call.1}
  #allocation0 [shape = 'u32[]', space=smem, size = 0x4, offset = 0x4, fixed_abs, tag = 'smem constant byte address 0x4 - core index']
  #allocation1 [shape = 'u32[144,128]{1,0:T(1,128)}', space=vmem, size = 0x12000, scoped, tag = 'internal scratch']
  #allocation4 [shape = 's32[]', space=sflag, size = 0x4, offset = 0, fixed_abs, tag = 'sflag constant byte address 0x0 - dummy sync flag']
  %s0 = inlined_call_operand.vmem [shape: u8[768,30], index: 0, kind: input, shape index: {}]
  %s1 = inlined_call_operand.vmem [shape: bf16[30,16], index: 1, kind: input, shape index: {}]
  %s2 = inlined_call_operand.vmem [shape: bf16[3,16,32], index: 2, kind: input, shape index: {}]
  %s3 = inlined_call_operand.hbm [shape: f32[3,8,16,16], index: 3, kind: output, shape index: {}]
  %s4 = sld [smem:[#allocation0]]
  $region45: #{tpu_custom_call.1} parent=0
    _
  %s6 = ssub.s32 1, %s4
  %s7 = scalar_select 0, %s6, %s4
  $region1: #{tpu_custom_call.1} parent=0
    #allocation2 [shape = 'u8[196608]{0}', space=vmem, size = 0x30000, scoped, tag = 'output window, operand 0']
    #allocation3 [shape = 's32[2]{0}', space=sflag, size = 0x8, scoped, tag = 'scoped memory for tpu_custom_call.1']
    %8 = vsyncpa [#allocation3], 0
    %s9 = scalar_lea.sflag [#allocation3], 1
    %10 = vsyncpa %s9, 0
    loop: start=0, step=1, limit=4
    $region2: #{tpu_custom_call.1} parent=1 // loop_pre_header
      _
    $region3: #{tpu_custom_call.1} parent=1 // loop_header
      %s12 = sphi 0, %s16
      %p13 = scmp.ge.s32.totalorder %s12, 4
      %s22 = sphi 0, %s24
      %s25 = sphi 0, %s22
      %s26 = sphi 0, %s25
      %s42 = sphi 0, %s26
      %s46 = sphi 0, %s46
      %s48 = sphi 0, %s46
      %s49 = sphi 0, %s48
      %s63 = sphi 0, %s49
      %s67 = sphi 0, %s67
      %s69 = sphi 0, %s67
      %s70 = sphi 0, %s69
      %s84 = sphi 0, %s70
      %s90 = sphi 0, %s92
      %s93 = sphi 0, %s90
      %s94 = sphi 0, %s93
      %s110 = sphi 0, %s94
    $region4: #{tpu_custom_call.1} parent=1 // loop_header_branch
      %15 = sbr.rel (%p13) target = $region8
    $region5: #{tpu_custom_call.1} parent=1 // loop_body
      %s17 = ssub.s32 %s12, 1
      %s18 = ssub.s32 %s12, 2
      %s19 = sadd.s32 %s12, 1
      %s20 = ssub.s32 %s12, %s19
      %p21 = scmp.eq.s32.totalorder %s20, 0
      %s23 = sadd.s32 %s22, 1
      %s24 = scalar_select %p21, %s22, %s23
      %p27 = pneg %p21
      %p28 = scmp.eq.s32.totalorder %s12, 1
      %p29 = por %p27, %p28
      %p30 = scmp.ne.s32.totalorder %s22, %s25
      %p31 = scmp.eq.s32.totalorder %s12, 0
      %p32 = por %p30, %p31
      %p33 = scmp.ne.s32.totalorder %s22, %s25
      %p34 = scmp.eq.s32.totalorder %s17, 1
      %p35 = por %p33, %p34
      %p36 = scmp.ne.s32.totalorder %s25, %s26
      %p37 = scmp.eq.s32.totalorder %s17, 0
      %p38 = por %p36, %p37
      %p39 = scmp.ne.s32.totalorder %s25, %s26
      %p40 = scmp.eq.s32.totalorder %s18, 1
      %p41 = por %p39, %p40
      %p43 = scmp.ne.s32.totalorder %s26, %s42
      %p44 = scmp.eq.s32.totalorder %s18, 0
      %p45 = por %p43, %p44
      %s47 = sadd.s32 %s46, 1
      %p50 = scmp.eq.s32.totalorder %s12, 1
      %p51 = scmp.ne.s32.totalorder %s46, %s48
      %p52 = scmp.eq.s32.totalorder %s12, 0
      %p53 = por %p51, %p52
      %p54 = scmp.ne.s32.totalorder %s46, %s48
      %p55 = scmp.eq.s32.totalorder %s17, 1
      %p56 = por %p54, %p55
      %p57 = scmp.ne.s32.totalorder %s48, %s49
      %p58 = scmp.eq.s32.totalorder %s17, 0
      %p59 = por %p57, %p58
      %p60 = scmp.ne.s32.totalorder %s48, %s49
      %p61 = scmp.eq.s32.totalorder %s18, 1
      %p62 = por %p60, %p61
      %p64 = scmp.ne.s32.totalorder %s49, %s63
      %p65 = scmp.eq.s32.totalorder %s18, 0
      %p66 = por %p64, %p65
      %s68 = sadd.s32 %s67, 1
      %p71 = scmp.eq.s32.totalorder %s12, 1
      %p72 = scmp.ne.s32.totalorder %s67, %s69
      %p73 = scmp.eq.s32.totalorder %s12, 0
      %p74 = por %p72, %p73
      %p75 = scmp.ne.s32.totalorder %s67, %s69
      %p76 = scmp.eq.s32.totalorder %s17, 1
      %p77 = por %p75, %p76
      %p78 = scmp.ne.s32.totalorder %s69, %s70
      %p79 = scmp.eq.s32.totalorder %s17, 0
      %p80 = por %p78, %p79
      %p81 = scmp.ne.s32.totalorder %s69, %s70
      %p82 = scmp.eq.s32.totalorder %s18, 1
      %p83 = por %p81, %p82
      %p85 = scmp.ne.s32.totalorder %s70, %s84
      %p86 = scmp.eq.s32.totalorder %s18, 0
      %p87 = por %p85, %p86
      %s88 = ssub.s32 %s12, %s19
      %p89 = scmp.eq.s32.totalorder %s88, 0
      %s91 = sadd.s32 %s90, 1
      %s92 = scalar_select %p89, %s90, %s91
      %p95 = pneg %p89
      %p96 = scmp.eq.s32.totalorder %s12, 1
      %p97 = por %p95, %p96
      %p98 = scmp.ne.s32.totalorder %s90, %s93
      %p99 = scmp.eq.s32.totalorder %s12, 0
      %p100 = por %p98, %p99
      %p101 = scmp.ne.s32.totalorder %s90, %s93
      %p102 = scmp.eq.s32.totalorder %s17, 1
      %p103 = por %p101, %p102
      %p104 = scmp.ne.s32.totalorder %s93, %s94
      %p105 = scmp.eq.s32.totalorder %s17, 0
      %p106 = por %p104, %p105
      %p107 = scmp.ne.s32.totalorder %s93, %s94
      %p108 = scmp.eq.s32.totalorder %s18, 1
      %p109 = por %p107, %p108
      %p111 = scmp.ne.s32.totalorder %s94, %s110
      %p112 = scmp.eq.s32.totalorder %s18, 0
      %p113 = por %p111, %p112
      %p114 = scmp.le.s32.totalorder 1, %s12
      %p115 = scmp.lt.s32.totalorder %s12, 3
      %p116 = pnand %p114, %p115
      %p117 = pneg %p116
      // Predicated region
      $region9: #{tpu_custom_call.1} parent=5 // pred_check
        _
      $region10: #{tpu_custom_call.1} parent=5 // pred_check_branch
        %119 = sbr.rel (%p116) target = $region12
      $region11: #{tpu_custom_call.1} parent=5 // pred_region
        %s120 = ssub.s32 %s12, 1
        // Predicated region
        $region13: #{tpu_custom_call.1} parent=11 // pred_check
          %p121 = pneg %p59
        $region14: #{tpu_custom_call.1} parent=11 // pred_check_branch
          %123 = sbr.rel (%p121) target = $region16
        $region15: #{tpu_custom_call.1} parent=11 // pred_region
          _
        $region16: #{tpu_custom_call.1} parent=11 // pred_fallthru
          _
        // Predicated region
        $region17: #{tpu_custom_call.1} parent=11 // pred_check
          %p124 = pneg %p80
        $region18: #{tpu_custom_call.1} parent=11 // pred_check_branch
          %126 = sbr.rel (%p124) target = $region20
        $region19: #{tpu_custom_call.1} parent=11 // pred_region
          _
        $region20: #{tpu_custom_call.1} parent=11 // pred_fallthru
          _
      $region12: #{tpu_custom_call.1} parent=5 // pred_fallthru
        _
      %p127 = scmp.lt.s32.totalorder %s12, 2
      // Predicated region
      $region21: #{tpu_custom_call.1} parent=5 // pred_check
        %p128 = pneg %p127
      $region22: #{tpu_custom_call.1} parent=5 // pred_check_branch
        %130 = sbr.rel (%p128) target = $region24
      $region23: #{tpu_custom_call.1} parent=5 // pred_region
        // Predicated region
        $region25: #{tpu_custom_call.1} parent=23 // pred_check
          %p131 = pneg %p32
        $region26: #{tpu_custom_call.1} parent=23 // pred_check_branch
          %133 = sbr.rel (%p131) target = $region28
        $region27: #{tpu_custom_call.1} parent=23 // pred_region
          %s134 = smul.u32 12, %s12
          %p135 = scmp.lt.s32.totalorder %s134, 23
          %s136 = scalar_select %p135, %s134, 23
          %s137 = smul.addr %s136, 8
          %s138 = scalar_lea.vmem %s0, %s137
          %s139 = smul.u32 12, %s12
        $region28: #{tpu_custom_call.1} parent=23 // pred_fallthru
          _
      $region24: #{tpu_custom_call.1} parent=5 // pred_fallthru
        _
      %p140 = scmp.le.s32.totalorder 1, %s12
      %p141 = scmp.lt.s32.totalorder %s12, 3
      %p142 = pnand %p140, %p141
      %p143 = pneg %p142
      // Predicated region
      $region29: #{tpu_custom_call.1} parent=5 // pred_check
        _
      $region30: #{tpu_custom_call.1} parent=5 // pred_check_branch
        %145 = sbr.rel (%p142) target = $region32
      $region31: #{tpu_custom_call.1} parent=5 // pred_region
        %s146 = ssub.s32 %s12, 1
        %s147 = smul.u32 12, %s17
        %p148 = scmp.lt.s32.totalorder %s147, 23
        %s149 = scalar_select %p148, %s147, 23
        %s150 = smul.addr %s149, 8
        %s151 = scalar_lea.vmem %s0, %s150
        %p152 = pneg %p38
        %p153 = pneg %p35
        %p154 = pneg %p59
        %p155 = pneg %p56
        %p156 = pneg %p80
        %p157 = pneg %p77
        %p158 = pneg %p106
        %p159 = pneg %p103
        %s160 = sand.u32 %s93, 1
        %s161 = scalar_lea.sflag [#allocation3], %s160
        %s162 = sand.u32 %s93, 1
        %s163 = smul.addr %s162, 192
        %s164 = scalar_lea.vmem [#allocation2], %s163
        %s165 = smul.u32 12, %s17
        %p166 = scmp.lt.s32.totalorder %s165, 23
        %s167 = scalar_select %p166, %s165, 23
        %s168 = smul.addr %s167, 8
        %s169 = scalar_lea.vmem %s0, %s168
        %s170 = smul.u32 12, %s17
        %s171 = smul.u32 4, %s17
        %v173 = vld [vmem:[%s1] sm:$0xf]
        %v174 = vld [vmem:[%s1 + $0x4] sm:$0xf]
        %v175 = vld [vmem:[%s1 + $0x8] sm:$0xf]
        %v176 = vld [vmem:[%s1 + $0xc] sm:$0x7]
        %v177 = vld [vmem:[%s169] sm:$0xff]
        %v178 = vld [vmem:[%s169 + $0x8] sm:$0xff]
        %v179 = vld [vmem:[%s169 + $0x10] sm:$0xff]
        %v180 = vld [vmem:[%s169 + $0x18] sm:$0xff]
        %v181 = vld [vmem:[%s169 + $0x20] sm:$0xff]
        %v182 = vld [vmem:[%s169 + $0x28] sm:$0xff]
        %v183 = vld [vmem:[%s169 + $0x30] sm:$0xff]
        %v184 = vld [vmem:[%s169 + $0x38] sm:$0xff]
        %v185 = vld [vmem:[%s169 + $0x40] sm:$0xff]
        %v186 = vld [vmem:[%s169 + $0x48] sm:$0xff]
        %v187 = vld [vmem:[%s169 + $0x50] sm:$0xff]
        %v188 = vld [vmem:[%s169 + $0x58] sm:$0xff]
        %v189 = vunpack.c.l.u8.bf16 %v177
        %v190 = vunpack.c.h.u8.bf16 %v177
        %v191 = vunpack.c.l.u8.bf16 %v178
        %v192 = vunpack.c.h.u8.bf16 %v178
        %v193 = vunpack.c.l.u8.bf16 %v179
        %v194 = vunpack.c.h.u8.bf16 %v179
        %v195 = vunpack.c.l.u8.bf16 %v180
        %v196 = vunpack.c.h.u8.bf16 %v180
        %v197 = vunpack.c.l.u8.bf16 %v181
        %v198 = vunpack.c.h.u8.bf16 %v181
        %v199 = vunpack.c.l.u8.bf16 %v182
        %v200 = vunpack.c.h.u8.bf16 %v182
        %v201 = vunpack.c.l.u8.bf16 %v183
        %v202 = vunpack.c.h.u8.bf16 %v183
        %v203 = vunpack.c.l.u8.bf16 %v184
        %v204 = vunpack.c.h.u8.bf16 %v184
        %v205 = vunpack.c.l.u8.bf16 %v185
        %v206 = vunpack.c.h.u8.bf16 %v185
        %v207 = vunpack.c.l.u8.bf16 %v186
        %v208 = vunpack.c.h.u8.bf16 %v186
        %v209 = vunpack.c.l.u8.bf16 %v187
        %v210 = vunpack.c.h.u8.bf16 %v187
        %v211 = vunpack.c.l.u8.bf16 %v188
        %v212 = vunpack.c.h.u8.bf16 %v188
        %v217 = vunpack.c.l.b16 %v173
        %v218 = vunpack.c.l.b16 %v174
        %v219 = vunpack.c.l.b16 %v175
        %v220 = vunpack.c.l.b16 %v176
        %v221 = vpack.c.b16 %v218, %v217
        %v222 = vpack.c.b16 %v220, %v219
        %vm224 = vcmask 244736
        %v226 = vsel %vm224, %v189, 0
        %v229 = vsel %vm224, %v190, 0
        %v232 = vsel %vm224, %v191, 0
        %v235 = vsel %vm224, %v192, 0
        %v238 = vsel %vm224, %v193, 0
        %v241 = vsel %vm224, %v194, 0
        %v244 = vsel %vm224, %v195, 0
        %v247 = vsel %vm224, %v196, 0
        %v250 = vsel %vm224, %v197, 0
        %v253 = vsel %vm224, %v198, 0
        %v256 = vsel %vm224, %v199, 0
        %v259 = vsel %vm224, %v200, 0
        %v262 = vsel %vm224, %v201, 0
        %v265 = vsel %vm224, %v202, 0
        %v268 = vsel %vm224, %v203, 0
        %v271 = vsel %vm224, %v204, 0
        %v274 = vsel %vm224, %v205, 0
        %v277 = vsel %vm224, %v206, 0
        %v280 = vsel %vm224, %v207, 0
        %v283 = vsel %vm224, %v208, 0
        %v286 = vsel %vm224, %v209, 0
        %v289 = vsel %vm224, %v210, 0
        %v292 = vsel %vm224, %v211, 0
        %v295 = vsel %vm224, %v212, 0
        %vm297 = vcmask 1046528
        %v299 = vsel %vm297, %v222, 0
        %301 = vmatprep.subr.bf16.mxu0 0
        %302 = vmatpush1.bf16.msra.mxu0 0
        %303 = vmatprep.subr.bf16.mxu0 0
        %304 = vmatpush1.bf16.msra.mxu0 0
        %305 = vmatprep.subr.bf16.mxu0 0
        %306 = vmatpush1.bf16.msra.mxu0 0
        %307 = vmatprep.subr.bf16.mxu0 0
        %308 = vmatpush1.bf16.msra.mxu0 0
        %309 = vmatprep.subr.bf16.mxu0 0
        %310 = vmatpush1.bf16.msra.mxu0 0
        %311 = vmatprep.subr.bf16.mxu0 0
        %312 = vmatpush1.bf16.msra.mxu0 0
        %313 = vmatprep.subr.bf16.mxu0 0
        %314 = vmatpush1.bf16.msra.mxu0 %v299
        %315 = vmatprep.subr.bf16.mxu0 0
        %316 = vmatpush1.bf16.msra.mxu0 %v221
        %317 = vmatprep.subr.bf16.mxu0 0
        %318 = vmatpush2.bf16.msra.mxu0 0
        %319 = vmatprep.subr.bf16.mxu0 0
        %320 = vmatpush2.bf16.msra.mxu0 0
        %321 = vmatprep.subr.bf16.mxu0 0
        %322 = vmatpush2.bf16.msra.mxu0 0
        %323 = vmatprep.subr.bf16.mxu0 0
        %324 = vmatpush2.bf16.msra.mxu0 0
        %325 = vmatprep.subr.bf16.mxu0 0
        %326 = vmatpush2.bf16.msra.mxu0 0
        %327 = vmatprep.subr.bf16.mxu0 0
        %328 = vmatpush2.bf16.msra.mxu0 0
        %329 = vmatprep.subr.bf16.mxu0 0
        %330 = vmatpush2.bf16.msra.mxu0 0
        %331 = vmatprep.subr.bf16.mxu0 0
        %332 = vmatpush2.bf16.msra.mxu0 0
        %333 = vmatprep.mubr.bf16.mxu0 0
        %334 = vmatmul.mubr.bf16.gmra.mxu0 %v226
        %v335 = vpop.f32.mrf.mxu0
        %v336 = vadd.f32 0.0, %v335
        %v337 = vpop.f32.mrf.mxu0
        %v338 = vpop.f32.mrf.mxu0
        %v339 = vadd.f32 0.0, %v338
        %v340 = vpop.f32.mrf.mxu0
        %341 = vmatprep.mubr.bf16.mxu0 0
        %342 = vmatmul.mubr.bf16.gmra.mxu0 %v229
        %v343 = vpop.f32.mrf.mxu0
        %v344 = vadd.f32 0.0, %v343
        %v345 = vpop.f32.mrf.mxu0
        %v346 = vpop.f32.mrf.mxu0
        %v347 = vadd.f32 0.0, %v346
        %v348 = vpop.f32.mrf.mxu0
        %349 = vmatprep.mubr.bf16.mxu0 0
        %350 = vmatmul.mubr.bf16.gmra.mxu0 %v232
        %v351 = vpop.f32.mrf.mxu0
        %v352 = vadd.f32 0.0, %v351
        %v353 = vpop.f32.mrf.mxu0
        %v354 = vpop.f32.mrf.mxu0
        %v355 = vadd.f32 0.0, %v354
        %v356 = vpop.f32.mrf.mxu0
        %357 = vmatprep.mubr.bf16.mxu0 0
        %358 = vmatmul.mubr.bf16.gmra.mxu0 %v235
        %v359 = vpop.f32.mrf.mxu0
        %v360 = vadd.f32 0.0, %v359
        %v361 = vpop.f32.mrf.mxu0
        %v362 = vpop.f32.mrf.mxu0
        %v363 = vadd.f32 0.0, %v362
        %v364 = vpop.f32.mrf.mxu0
        %365 = vmatprep.mubr.bf16.mxu0 0
        %366 = vmatmul.mubr.bf16.gmra.mxu0 %v238
        %v367 = vpop.f32.mrf.mxu0
        %v368 = vadd.f32 0.0, %v367
        %v369 = vpop.f32.mrf.mxu0
        %v370 = vpop.f32.mrf.mxu0
        %v371 = vadd.f32 0.0, %v370
        %v372 = vpop.f32.mrf.mxu0
        %373 = vmatprep.mubr.bf16.mxu0 0
        %374 = vmatmul.mubr.bf16.gmra.mxu0 %v241
        %v375 = vpop.f32.mrf.mxu0
        %v376 = vadd.f32 0.0, %v375
        %v377 = vpop.f32.mrf.mxu0
        %v378 = vpop.f32.mrf.mxu0
        %v379 = vadd.f32 0.0, %v378
        %v380 = vpop.f32.mrf.mxu0
        %381 = vmatprep.mubr.bf16.mxu0 0
        %382 = vmatmul.mubr.bf16.gmra.mxu0 %v244
        %v383 = vpop.f32.mrf.mxu0
        %v384 = vadd.f32 0.0, %v383
        %v385 = vpop.f32.mrf.mxu0
        %v386 = vpop.f32.mrf.mxu0
        %v387 = vadd.f32 0.0, %v386
        %v388 = vpop.f32.mrf.mxu0
        %389 = vmatprep.mubr.bf16.mxu0 0
        %390 = vmatmul.mubr.bf16.gmra.mxu0 %v247
        %v391 = vpop.f32.mrf.mxu0
        %v392 = vadd.f32 0.0, %v391
        %v393 = vpop.f32.mrf.mxu0
        %v394 = vpop.f32.mrf.mxu0
        %v395 = vadd.f32 0.0, %v394
        %v396 = vpop.f32.mrf.mxu0
        %397 = vmatprep.mubr.bf16.mxu0 0
        %398 = vmatmul.mubr.bf16.gmra.mxu0 %v250
        %v399 = vpop.f32.mrf.mxu0
        %v400 = vadd.f32 0.0, %v399
        %v401 = vpop.f32.mrf.mxu0
        %v402 = vpop.f32.mrf.mxu0
        %v403 = vadd.f32 0.0, %v402
        %v404 = vpop.f32.mrf.mxu0
        %405 = vmatprep.mubr.bf16.mxu0 0
        %406 = vmatmul.mubr.bf16.gmra.mxu0 %v253
        %v407 = vpop.f32.mrf.mxu0
        %v408 = vadd.f32 0.0, %v407
        %v409 = vpop.f32.mrf.mxu0
        %v410 = vpop.f32.mrf.mxu0
        %v411 = vadd.f32 0.0, %v410
        %v412 = vpop.f32.mrf.mxu0
        %413 = vmatprep.mubr.bf16.mxu0 0
        %414 = vmatmul.mubr.bf16.gmra.mxu0 %v256
        %v415 = vpop.f32.mrf.mxu0
        %v416 = vadd.f32 0.0, %v415
        %v417 = vpop.f32.mrf.mxu0
        %v418 = vpop.f32.mrf.mxu0
        %v419 = vadd.f32 0.0, %v418
        %v420 = vpop.f32.mrf.mxu0
        %421 = vmatprep.mubr.bf16.mxu0 0
        %422 = vmatmul.mubr.bf16.gmra.mxu0 %v259
        %v423 = vpop.f32.mrf.mxu0
        %v424 = vadd.f32 0.0, %v423
        %v425 = vpop.f32.mrf.mxu0
        %v426 = vpop.f32.mrf.mxu0
        %v427 = vadd.f32 0.0, %v426
        %v428 = vpop.f32.mrf.mxu0
        %429 = vmatprep.mubr.bf16.mxu0 0
        %430 = vmatmul.mubr.bf16.gmra.mxu0 %v262
        %v431 = vpop.f32.mrf.mxu0
        %v432 = vadd.f32 0.0, %v431
        %v433 = vpop.f32.mrf.mxu0
        %v434 = vpop.f32.mrf.mxu0
        %v435 = vadd.f32 0.0, %v434
        %v436 = vpop.f32.mrf.mxu0
        %437 = vmatprep.mubr.bf16.mxu0 0
        %438 = vmatmul.mubr.bf16.gmra.mxu0 %v265
        %v439 = vpop.f32.mrf.mxu0
        %v440 = vadd.f32 0.0, %v439
        %v441 = vpop.f32.mrf.mxu0
        %v442 = vpop.f32.mrf.mxu0
        %v443 = vadd.f32 0.0, %v442
        %v444 = vpop.f32.mrf.mxu0
        %445 = vmatprep.mubr.bf16.mxu0 0
        %446 = vmatmul.mubr.bf16.gmra.mxu0 %v268
        %v447 = vpop.f32.mrf.mxu0
        %v448 = vadd.f32 0.0, %v447
        %v449 = vpop.f32.mrf.mxu0
        %v450 = vpop.f32.mrf.mxu0
        %v451 = vadd.f32 0.0, %v450
        %v452 = vpop.f32.mrf.mxu0
        %453 = vmatprep.mubr.bf16.mxu0 0
        %454 = vmatmul.mubr.bf16.gmra.mxu0 %v271
        %v455 = vpop.f32.mrf.mxu0
        %v456 = vadd.f32 0.0, %v455
        %v457 = vpop.f32.mrf.mxu0
        %v458 = vpop.f32.mrf.mxu0
        %v459 = vadd.f32 0.0, %v458
        %v460 = vpop.f32.mrf.mxu0
        %461 = vmatprep.mubr.bf16.mxu0 0
        %462 = vmatmul.mubr.bf16.gmra.mxu0 %v274
        %v463 = vpop.f32.mrf.mxu0
        %v464 = vadd.f32 0.0, %v463
        %v465 = vpop.f32.mrf.mxu0
        %v466 = vpop.f32.mrf.mxu0
        %v467 = vadd.f32 0.0, %v466
        %v468 = vpop.f32.mrf.mxu0
        %469 = vmatprep.mubr.bf16.mxu0 0
        %470 = vmatmul.mubr.bf16.gmra.mxu0 %v277
        %v471 = vpop.f32.mrf.mxu0
        %v472 = vadd.f32 0.0, %v471
        %v473 = vpop.f32.mrf.mxu0
        %v474 = vpop.f32.mrf.mxu0
        %v475 = vadd.f32 0.0, %v474
        %v476 = vpop.f32.mrf.mxu0
        %477 = vmatprep.mubr.bf16.mxu0 0
        %478 = vmatmul.mubr.bf16.gmra.mxu0 %v280
        %v479 = vpop.f32.mrf.mxu0
        %v480 = vadd.f32 0.0, %v479
        %v481 = vpop.f32.mrf.mxu0
        %v482 = vpop.f32.mrf.mxu0
        %v483 = vadd.f32 0.0, %v482
        %v484 = vpop.f32.mrf.mxu0
        %485 = vmatprep.mubr.bf16.mxu0 0
        %486 = vmatmul.mubr.bf16.gmra.mxu0 %v283
        %v487 = vpop.f32.mrf.mxu0
        %v488 = vadd.f32 0.0, %v487
        %v489 = vpop.f32.mrf.mxu0
        %v490 = vpop.f32.mrf.mxu0
        %v491 = vadd.f32 0.0, %v490
        %v492 = vpop.f32.mrf.mxu0
        %493 = vmatprep.mubr.bf16.mxu0 0
        %494 = vmatmul.mubr.bf16.gmra.mxu0 %v286
        %v495 = vpop.f32.mrf.mxu0
        %v496 = vadd.f32 0.0, %v495
        %v497 = vpop.f32.mrf.mxu0
        %v498 = vpop.f32.mrf.mxu0
        %v499 = vadd.f32 0.0, %v498
        %v500 = vpop.f32.mrf.mxu0
        %501 = vmatprep.mubr.bf16.mxu0 0
        %502 = vmatmul.mubr.bf16.gmra.mxu0 %v289
        %v503 = vpop.f32.mrf.mxu0
        %v504 = vadd.f32 0.0, %v503
        %v505 = vpop.f32.mrf.mxu0
        %v506 = vpop.f32.mrf.mxu0
        %v507 = vadd.f32 0.0, %v506
        %v508 = vpop.f32.mrf.mxu0
        %509 = vmatprep.mubr.bf16.mxu0 0
        %510 = vmatmul.mubr.bf16.gmra.mxu0 %v292
        %v511 = vpop.f32.mrf.mxu0
        %v512 = vadd.f32 0.0, %v511
        %v513 = vpop.f32.mrf.mxu0
        %v514 = vpop.f32.mrf.mxu0
        %v515 = vadd.f32 0.0, %v514
        %v516 = vpop.f32.mrf.mxu0
        %517 = vmatprep.mubr.bf16.mxu0 0
        %518 = vmatmul.mubr.bf16.gmra.mxu0 %v295
        %v519 = vpop.f32.mrf.mxu0
        %v520 = vadd.f32 0.0, %v519
        %v521 = vpop.f32.mrf.mxu0
        %v522 = vpop.f32.mrf.mxu0
        %v523 = vadd.f32 0.0, %v522
        %v524 = vpop.f32.mrf.mxu0
        %525 = vdwg.mxu0
        %v526 = vpack.c.bf16 %v339, %v336
        %v527 = vpack.c.bf16 %v347, %v344
        %v528 = vpack.c.bf16 %v355, %v352
        %v529 = vpack.c.bf16 %v363, %v360
        %v530 = vpack.c.bf16 %v371, %v368
        %v531 = vpack.c.bf16 %v379, %v376
        %v532 = vpack.c.bf16 %v387, %v384
        %v533 = vpack.c.bf16 %v395, %v392
        %v534 = vpack.c.bf16 %v403, %v400
        %v535 = vpack.c.bf16 %v411, %v408
        %v536 = vpack.c.bf16 %v419, %v416
        %v537 = vpack.c.bf16 %v427, %v424
        %v538 = vpack.c.bf16 %v435, %v432
        %v539 = vpack.c.bf16 %v443, %v440
        %v540 = vpack.c.bf16 %v451, %v448
        %v541 = vpack.c.bf16 %v459, %v456
        %v542 = vpack.c.bf16 %v467, %v464
        %v543 = vpack.c.bf16 %v475, %v472
        %v544 = vpack.c.bf16 %v483, %v480
        %v545 = vpack.c.bf16 %v491, %v488
        %v546 = vpack.c.bf16 %v499, %v496
        %v547 = vpack.c.bf16 %v507, %v504
        %v548 = vpack.c.bf16 %v515, %v512
        %v549 = vpack.c.bf16 %v523, %v520
        %v550 = vld [vmem:[%s2] sm:$0xf]
        %v551 = vld [vmem:[%s2 + $0x4] sm:$0xf]
        %v554 = vunpack.c.l.b16 %v550
        %v555 = vunpack.c.l.b16 %v551
        %v556 = vpack.c.b16 %v555, %v554
        %vm557 = vcmask 261120
        %v559 = vsel %vm557, %v556, 0
        %561 = vmatprep.subr.bf16.mxu0 0
        %562 = vmatpush1.bf16.msra.mxu0 0
        %563 = vmatprep.subr.bf16.mxu0 0
        %564 = vmatpush1.bf16.msra.mxu0 0
        %565 = vmatprep.subr.bf16.mxu0 0
        %566 = vmatpush1.bf16.msra.mxu0 0
        %567 = vmatprep.subr.bf16.mxu0 0
        %568 = vmatpush1.bf16.msra.mxu0 0
        %569 = vmatprep.subr.bf16.mxu0 0
        %570 = vmatpush1.bf16.msra.mxu0 0
        %571 = vmatprep.subr.bf16.mxu0 0
        %572 = vmatpush1.bf16.msra.mxu0 0
        %573 = vmatprep.subr.bf16.mxu0 0
        %574 = vmatpush1.bf16.msra.mxu0 %v527
        %575 = vmatprep.subr.bf16.mxu0 0
        %576 = vmatpush1.bf16.msra.mxu0 %v526
        %577 = vmatprep.subr.bf16.mxu0 0
        %578 = vmatpush2.bf16.msra.mxu0 0
        %579 = vmatprep.subr.bf16.mxu0 0
        %580 = vmatpush2.bf16.msra.mxu0 0
        %581 = vmatprep.subr.bf16.mxu0 0
        %582 = vmatpush2.bf16.msra.mxu0 0
        %583 = vmatprep.subr.bf16.mxu0 0
        %584 = vmatpush2.bf16.msra.mxu0 0
        %585 = vmatprep.subr.bf16.mxu0 0
        %586 = vmatpush2.bf16.msra.mxu0 0
        %587 = vmatprep.subr.bf16.mxu0 0
        %588 = vmatpush2.bf16.msra.mxu0 0
        %589 = vmatprep.subr.bf16.mxu0 0
        %590 = vmatpush2.bf16.msra.mxu0 0
        %591 = vmatprep.subr.bf16.mxu0 0
        %592 = vmatpush2.bf16.msra.mxu0 0
        %593 = vmatprep.mubr.bf16.mxu0 0
        %594 = vmatmul.mubr.bf16.gmra.mxu0 %v559
        %v595 = vpop.f32.mrf.mxu0
        %v596 = vadd.f32 0.0, %v595
        %v597 = vpop.f32.mrf.mxu0
        %v598 = vpop.f32.mrf.mxu0
        %v599 = vadd.f32 0.0, %v598
        %v600 = vpop.f32.mrf.mxu0
        %601 = vdwg.mxu0
        %v602 = vsub.f32 %v596, 2.0
        %v603 = vsub.f32 %v599, 2.0
        %vm604 = vcmask 130048
        %605 = vst.msk [vmem:[%s164] sm:$0xff] %vm604, %v602
        %606 = vst.msk [vmem:[%s164 + $0x8] sm:$0xff] %vm604, %v603
        %607 = vmatprep.subr.bf16.mxu0 0
        %608 = vmatpush1.bf16.msra.mxu0 0
        %609 = vmatprep.subr.bf16.mxu0 0
        %610 = vmatpush1.bf16.msra.mxu0 0
        %611 = vmatprep.subr.bf16.mxu0 0
        %612 = vmatpush1.bf16.msra.mxu0 0
        %613 = vmatprep.subr.bf16.mxu0 0
        %614 = vmatpush1.bf16.msra.mxu0 0
        %615 = vmatprep.subr.bf16.mxu0 0
        %616 = vmatpush1.bf16.msra.mxu0 0
        %617 = vmatprep.subr.bf16.mxu0 0
        %618 = vmatpush1.bf16.msra.mxu0 0
        %619 = vmatprep.subr.bf16.mxu0 0
        %620 = vmatpush1.bf16.msra.mxu0 %v533
        %621 = vmatprep.subr.bf16.mxu0 0
        %622 = vmatpush1.bf16.msra.mxu0 %v532
        %623 = vmatprep.subr.bf16.mxu0 0
        %624 = vmatpush2.bf16.msra.mxu0 0
        %625 = vmatprep.subr.bf16.mxu0 0
        %626 = vmatpush2.bf16.msra.mxu0 0
        %627 = vmatprep.subr.bf16.mxu0 0
        %628 = vmatpush2.bf16.msra.mxu0 0
        %629 = vmatprep.subr.bf16.mxu0 0
        %630 = vmatpush2.bf16.msra.mxu0 0
        %631 = vmatprep.subr.bf16.mxu0 0
        %632 = vmatpush2.bf16.msra.mxu0 0
        %633 = vmatprep.subr.bf16.mxu0 0
        %634 = vmatpush2.bf16.msra.mxu0 0
        %635 = vmatprep.subr.bf16.mxu0 0
        %636 = vmatpush2.bf16.msra.mxu0 0
        %637 = vmatprep.subr.bf16.mxu0 0
        %638 = vmatpush2.bf16.msra.mxu0 0
        %639 = vmatprep.mubr.bf16.mxu0 0
        %640 = vmatmul.mubr.bf16.gmra.mxu0 %v559
        %v641 = vpop.f32.mrf.mxu0
        %v642 = vadd.f32 0.0, %v641
        %v643 = vpop.f32.mrf.mxu0
        %v644 = vpop.f32.mrf.mxu0
        %v645 = vadd.f32 0.0, %v644
        %v646 = vpop.f32.mrf.mxu0
        %647 = vdwg.mxu0
        %v648 = vsub.f32 %v642, 2.0
        %v649 = vsub.f32 %v645, 2.0
        %s650 = scalar_lea.vmem %s164, 16 [#allocation2]
        %651 = vst.msk [vmem:[%s650] sm:$0xff] %vm604, %v648
        %652 = vst.msk [vmem:[%s650 + $0x8] sm:$0xff] %vm604, %v649
        %653 = vmatprep.subr.bf16.mxu0 0
        %654 = vmatpush1.bf16.msra.mxu0 0
        %655 = vmatprep.subr.bf16.mxu0 0
        %656 = vmatpush1.bf16.msra.mxu0 0
        %657 = vmatprep.subr.bf16.mxu0 0
        %658 = vmatpush1.bf16.msra.mxu0 0
        %659 = vmatprep.subr.bf16.mxu0 0
        %660 = vmatpush1.bf16.msra.mxu0 0
        %661 = vmatprep.subr.bf16.mxu0 0
        %662 = vmatpush1.bf16.msra.mxu0 0
        %663 = vmatprep.subr.bf16.mxu0 0
        %664 = vmatpush1.bf16.msra.mxu0 0
        %665 = vmatprep.subr.bf16.mxu0 0
        %666 = vmatpush1.bf16.msra.mxu0 %v539
        %667 = vmatprep.subr.bf16.mxu0 0
        %668 = vmatpush1.bf16.msra.mxu0 %v538
        %669 = vmatprep.subr.bf16.mxu0 0
        %670 = vmatpush2.bf16.msra.mxu0 0
        %671 = vmatprep.subr.bf16.mxu0 0
        %672 = vmatpush2.bf16.msra.mxu0 0
        %673 = vmatprep.subr.bf16.mxu0 0
        %674 = vmatpush2.bf16.msra.mxu0 0
        %675 = vmatprep.subr.bf16.mxu0 0
        %676 = vmatpush2.bf16.msra.mxu0 0
        %677 = vmatprep.subr.bf16.mxu0 0
        %678 = vmatpush2.bf16.msra.mxu0 0
        %679 = vmatprep.subr.bf16.mxu0 0
        %680 = vmatpush2.bf16.msra.mxu0 0
        %681 = vmatprep.subr.bf16.mxu0 0
        %682 = vmatpush2.bf16.msra.mxu0 0
        %683 = vmatprep.subr.bf16.mxu0 0
        %684 = vmatpush2.bf16.msra.mxu0 0
        %685 = vmatprep.mubr.bf16.mxu0 0
        %686 = vmatmul.mubr.bf16.gmra.mxu0 %v559
        %v687 = vpop.f32.mrf.mxu0
        %v688 = vadd.f32 0.0, %v687
        %v689 = vpop.f32.mrf.mxu0
        %v690 = vpop.f32.mrf.mxu0
        %v691 = vadd.f32 0.0, %v690
        %v692 = vpop.f32.mrf.mxu0
        %693 = vdwg.mxu0
        %v694 = vsub.f32 %v688, 2.0
        %v695 = vsub.f32 %v691, 2.0
        %s696 = scalar_lea.vmem %s164, 32 [#allocation2]
        %697 = vst.msk [vmem:[%s696] sm:$0xff] %vm604, %v694
        %698 = vst.msk [vmem:[%s696 + $0x8] sm:$0xff] %vm604, %v695
        %699 = vmatprep.subr.bf16.mxu0 0
        %700 = vmatpush1.bf16.msra.mxu0 0
        %701 = vmatprep.subr.bf16.mxu0 0
        %702 = vmatpush1.bf16.msra.mxu0 0
        %703 = vmatprep.subr.bf16.mxu0 0
        %704 = vmatpush1.bf16.msra.mxu0 0
        %705 = vmatprep.subr.bf16.mxu0 0
        %706 = vmatpush1.bf16.msra.mxu0 0
        %707 = vmatprep.subr.bf16.mxu0 0
        %708 = vmatpush1.bf16.msra.mxu0 0
        %709 = vmatprep.subr.bf16.mxu0 0
        %710 = vmatpush1.bf16.msra.mxu0 0
        %711 = vmatprep.subr.bf16.mxu0 0
        %712 = vmatpush1.bf16.msra.mxu0 %v545
        %713 = vmatprep.subr.bf16.mxu0 0
        %714 = vmatpush1.bf16.msra.mxu0 %v544
        %715 = vmatprep.subr.bf16.mxu0 0
        %716 = vmatpush2.bf16.msra.mxu0 0
        %717 = vmatprep.subr.bf16.mxu0 0
        %718 = vmatpush2.bf16.msra.mxu0 0
        %719 = vmatprep.subr.bf16.mxu0 0
        %720 = vmatpush2.bf16.msra.mxu0 0
        %721 = vmatprep.subr.bf16.mxu0 0
        %722 = vmatpush2.bf16.msra.mxu0 0
        %723 = vmatprep.subr.bf16.mxu0 0
        %724 = vmatpush2.bf16.msra.mxu0 0
        %725 = vmatprep.subr.bf16.mxu0 0
        %726 = vmatpush2.bf16.msra.mxu0 0
        %727 = vmatprep.subr.bf16.mxu0 0
        %728 = vmatpush2.bf16.msra.mxu0 0
        %729 = vmatprep.subr.bf16.mxu0 0
        %730 = vmatpush2.bf16.msra.mxu0 0
        %731 = vmatprep.mubr.bf16.mxu0 0
        %732 = vmatmul.mubr.bf16.gmra.mxu0 %v559
        %v733 = vpop.f32.mrf.mxu0
        %v734 = vadd.f32 0.0, %v733
        %v735 = vpop.f32.mrf.mxu0
        %v736 = vpop.f32.mrf.mxu0
        %v737 = vadd.f32 0.0, %v736
        %v738 = vpop.f32.mrf.mxu0
        %739 = vdwg.mxu0
        %v740 = vsub.f32 %v734, 2.0
        %v741 = vsub.f32 %v737, 2.0
        %s742 = scalar_lea.vmem %s164, 48 [#allocation2]
        %743 = vst.msk [vmem:[%s742] sm:$0xff] %vm604, %v740
        %744 = vst.msk [vmem:[%s742 + $0x8] sm:$0xff] %vm604, %v741
        %s745 = scalar_lea.vmem %s2, 8
        %v746 = vld [vmem:[%s745] sm:$0xf]
        %v747 = vld [vmem:[%s745 + $0x4] sm:$0xf]
        %v750 = vunpack.c.l.b16 %v746
        %v751 = vunpack.c.l.b16 %v747
        %v752 = vpack.c.b16 %v751, %v750
        %v754 = vsel %vm557, %v752, 0
        %756 = vmatprep.subr.bf16.mxu0 0
        %757 = vmatpush1.bf16.msra.mxu0 0
        %758 = vmatprep.subr.bf16.mxu0 0
        %759 = vmatpush1.bf16.msra.mxu0 0
        %760 = vmatprep.subr.bf16.mxu0 0
        %761 = vmatpush1.bf16.msra.mxu0 0
        %762 = vmatprep.subr.bf16.mxu0 0
        %763 = vmatpush1.bf16.msra.mxu0 0
        %764 = vmatprep.subr.bf16.mxu0 0
        %765 = vmatpush1.bf16.msra.mxu0 0
        %766 = vmatprep.subr.bf16.mxu0 0
        %767 = vmatpush1.bf16.msra.mxu0 0
        %768 = vmatprep.subr.bf16.mxu0 0
        %769 = vmatpush1.bf16.msra.mxu0 %v529
        %770 = vmatprep.subr.bf16.mxu0 0
        %771 = vmatpush1.bf16.msra.mxu0 %v528
        %772 = vmatprep.subr.bf16.mxu0 0
        %773 = vmatpush2.bf16.msra.mxu0 0
        %774 = vmatprep.subr.bf16.mxu0 0
        %775 = vmatpush2.bf16.msra.mxu0 0
        %776 = vmatprep.subr.bf16.mxu0 0
        %777 = vmatpush2.bf16.msra.mxu0 0
        %778 = vmatprep.subr.bf16.mxu0 0
        %779 = vmatpush2.bf16.msra.mxu0 0
        %780 = vmatprep.subr.bf16.mxu0 0
        %781 = vmatpush2.bf16.msra.mxu0 0
        %782 = vmatprep.subr.bf16.mxu0 0
        %783 = vmatpush2.bf16.msra.mxu0 0
        %784 = vmatprep.subr.bf16.mxu0 0
        %785 = vmatpush2.bf16.msra.mxu0 0
        %786 = vmatprep.subr.bf16.mxu0 0
        %787 = vmatpush2.bf16.msra.mxu0 0
        %788 = vmatprep.mubr.bf16.mxu0 0
        %789 = vmatmul.mubr.bf16.gmra.mxu0 %v754
        %v790 = vpop.f32.mrf.mxu0
        %v791 = vadd.f32 0.0, %v790
        %v792 = vpop.f32.mrf.mxu0
        %v793 = vpop.f32.mrf.mxu0
        %v794 = vadd.f32 0.0, %v793
        %v795 = vpop.f32.mrf.mxu0
        %796 = vdwg.mxu0
        %v797 = vsub.f32 %v791, 2.0
        %v798 = vsub.f32 %v794, 2.0
        %s799 = scalar_lea.vmem %s164, 64 [#allocation2]
        %800 = vst.msk [vmem:[%s799] sm:$0xff] %vm604, %v797
        %801 = vst.msk [vmem:[%s799 + $0x8] sm:$0xff] %vm604, %v798
        %802 = vmatprep.subr.bf16.mxu0 0
        %803 = vmatpush1.bf16.msra.mxu0 0
        %804 = vmatprep.subr.bf16.mxu0 0
        %805 = vmatpush1.bf16.msra.mxu0 0
        %806 = vmatprep.subr.bf16.mxu0 0
        %807 = vmatpush1.bf16.msra.mxu0 0
        %808 = vmatprep.subr.bf16.mxu0 0
        %809 = vmatpush1.bf16.msra.mxu0 0
        %810 = vmatprep.subr.bf16.mxu0 0
        %811 = vmatpush1.bf16.msra.mxu0 0
        %812 = vmatprep.subr.bf16.mxu0 0
        %813 = vmatpush1.bf16.msra.mxu0 0
        %814 = vmatprep.subr.bf16.mxu0 0
        %815 = vmatpush1.bf16.msra.mxu0 %v535
        %816 = vmatprep.subr.bf16.mxu0 0
        %817 = vmatpush1.bf16.msra.mxu0 %v534
        %818 = vmatprep.subr.bf16.mxu0 0
        %819 = vmatpush2.bf16.msra.mxu0 0
        %820 = vmatprep.subr.bf16.mxu0 0
        %821 = vmatpush2.bf16.msra.mxu0 0
        %822 = vmatprep.subr.bf16.mxu0 0
        %823 = vmatpush2.bf16.msra.mxu0 0
        %824 = vmatprep.subr.bf16.mxu0 0
        %825 = vmatpush2.bf16.msra.mxu0 0
        %826 = vmatprep.subr.bf16.mxu0 0
        %827 = vmatpush2.bf16.msra.mxu0 0
        %828 = vmatprep.subr.bf16.mxu0 0
        %829 = vmatpush2.bf16.msra.mxu0 0
        %830 = vmatprep.subr.bf16.mxu0 0
        %831 = vmatpush2.bf16.msra.mxu0 0
        %832 = vmatprep.subr.bf16.mxu0 0
        %833 = vmatpush2.bf16.msra.mxu0 0
        %834 = vmatprep.mubr.bf16.mxu0 0
        %835 = vmatmul.mubr.bf16.gmra.mxu0 %v754
        %v836 = vpop.f32.mrf.mxu0
        %v837 = vadd.f32 0.0, %v836
        %v838 = vpop.f32.mrf.mxu0
        %v839 = vpop.f32.mrf.mxu0
        %v840 = vadd.f32 0.0, %v839
        %v841 = vpop.f32.mrf.mxu0
        %842 = vdwg.mxu0
        %v843 = vsub.f32 %v837, 2.0
        %v844 = vsub.f32 %v840, 2.0
        %s845 = scalar_lea.vmem %s164, 80 [#allocation2]
        %846 = vst.msk [vmem:[%s845] sm:$0xff] %vm604, %v843
        %847 = vst.msk [vmem:[%s845 + $0x8] sm:$0xff] %vm604, %v844
        %848 = vmatprep.subr.bf16.mxu0 0
        %849 = vmatpush1.bf16.msra.mxu0 0
        %850 = vmatprep.subr.bf16.mxu0 0
        %851 = vmatpush1.bf16.msra.mxu0 0
        %852 = vmatprep.subr.bf16.mxu0 0
        %853 = vmatpush1.bf16.msra.mxu0 0
        %854 = vmatprep.subr.bf16.mxu0 0
        %855 = vmatpush1.bf16.msra.mxu0 0
        %856 = vmatprep.subr.bf16.mxu0 0
        %857 = vmatpush1.bf16.msra.mxu0 0
        %858 = vmatprep.subr.bf16.mxu0 0
        %859 = vmatpush1.bf16.msra.mxu0 0
        %860 = vmatprep.subr.bf16.mxu0 0
        %861 = vmatpush1.bf16.msra.mxu0 %v541
        %862 = vmatprep.subr.bf16.mxu0 0
        %863 = vmatpush1.bf16.msra.mxu0 %v540
        %864 = vmatprep.subr.bf16.mxu0 0
        %865 = vmatpush2.bf16.msra.mxu0 0
        %866 = vmatprep.subr.bf16.mxu0 0
        %867 = vmatpush2.bf16.msra.mxu0 0
        %868 = vmatprep.subr.bf16.mxu0 0
        %869 = vmatpush2.bf16.msra.mxu0 0
        %870 = vmatprep.subr.bf16.mxu0 0
        %871 = vmatpush2.bf16.msra.mxu0 0
        %872 = vmatprep.subr.bf16.mxu0 0
        %873 = vmatpush2.bf16.msra.mxu0 0
        %874 = vmatprep.subr.bf16.mxu0 0
        %875 = vmatpush2.bf16.msra.mxu0 0
        %876 = vmatprep.subr.bf16.mxu0 0
        %877 = vmatpush2.bf16.msra.mxu0 0
        %878 = vmatprep.subr.bf16.mxu0 0
        %879 = vmatpush2.bf16.msra.mxu0 0
        %880 = vmatprep.mubr.bf16.mxu0 0
        %881 = vmatmul.mubr.bf16.gmra.mxu0 %v754
        %v882 = vpop.f32.mrf.mxu0
        %v883 = vadd.f32 0.0, %v882
        %v884 = vpop.f32.mrf.mxu0
        %v885 = vpop.f32.mrf.mxu0
        %v886 = vadd.f32 0.0, %v885
        %v887 = vpop.f32.mrf.mxu0
        %888 = vdwg.mxu0
        %v889 = vsub.f32 %v883, 2.0
        %v890 = vsub.f32 %v886, 2.0
        %s891 = scalar_lea.vmem %s164, 96 [#allocation2]
        %892 = vst.msk [vmem:[%s891] sm:$0xff] %vm604, %v889
        %893 = vst.msk [vmem:[%s891 + $0x8] sm:$0xff] %vm604, %v890
        %894 = vmatprep.subr.bf16.mxu0 0
        %895 = vmatpush1.bf16.msra.mxu0 0
        %896 = vmatprep.subr.bf16.mxu0 0
        %897 = vmatpush1.bf16.msra.mxu0 0
        %898 = vmatprep.subr.bf16.mxu0 0
        %899 = vmatpush1.bf16.msra.mxu0 0
        %900 = vmatprep.subr.bf16.mxu0 0
        %901 = vmatpush1.bf16.msra.mxu0 0
        %902 = vmatprep.subr.bf16.mxu0 0
        %903 = vmatpush1.bf16.msra.mxu0 0
        %904 = vmatprep.subr.bf16.mxu0 0
        %905 = vmatpush1.bf16.msra.mxu0 0
        %906 = vmatprep.subr.bf16.mxu0 0
        %907 = vmatpush1.bf16.msra.mxu0 %v547
        %908 = vmatprep.subr.bf16.mxu0 0
        %909 = vmatpush1.bf16.msra.mxu0 %v546
        %910 = vmatprep.subr.bf16.mxu0 0
        %911 = vmatpush2.bf16.msra.mxu0 0
        %912 = vmatprep.subr.bf16.mxu0 0
        %913 = vmatpush2.bf16.msra.mxu0 0
        %914 = vmatprep.subr.bf16.mxu0 0
        %915 = vmatpush2.bf16.msra.mxu0 0
        %916 = vmatprep.subr.bf16.mxu0 0
        %917 = vmatpush2.bf16.msra.mxu0 0
        %918 = vmatprep.subr.bf16.mxu0 0
        %919 = vmatpush2.bf16.msra.mxu0 0
        %920 = vmatprep.subr.bf16.mxu0 0
        %921 = vmatpush2.bf16.msra.mxu0 0
        %922 = vmatprep.subr.bf16.mxu0 0
        %923 = vmatpush2.bf16.msra.mxu0 0
        %924 = vmatprep.subr.bf16.mxu0 0
        %925 = vmatpush2.bf16.msra.mxu0 0
        %926 = vmatprep.mubr.bf16.mxu0 0
        %927 = vmatmul.mubr.bf16.gmra.mxu0 %v754
        %v928 = vpop.f32.mrf.mxu0
        %v929 = vadd.f32 0.0, %v928
        %v930 = vpop.f32.mrf.mxu0
        %v931 = vpop.f32.mrf.mxu0
        %v932 = vadd.f32 0.0, %v931
        %v933 = vpop.f32.mrf.mxu0
        %934 = vdwg.mxu0
        %v935 = vsub.f32 %v929, 2.0
        %v936 = vsub.f32 %v932, 2.0
        %s937 = scalar_lea.vmem %s164, 112 [#allocation2]
        %938 = vst.msk [vmem:[%s937] sm:$0xff] %vm604, %v935
        %939 = vst.msk [vmem:[%s937 + $0x8] sm:$0xff] %vm604, %v936
        %s940 = scalar_lea.vmem %s2, 16
        %v941 = vld [vmem:[%s940] sm:$0xf]
        %v942 = vld [vmem:[%s940 + $0x4] sm:$0xf]
        %v945 = vunpack.c.l.b16 %v941
        %v946 = vunpack.c.l.b16 %v942
        %v947 = vpack.c.b16 %v946, %v945
        %v949 = vsel %vm557, %v947, 0
        %951 = vmatprep.subr.bf16.mxu0 0
        %952 = vmatpush1.bf16.msra.mxu0 0
        %953 = vmatprep.subr.bf16.mxu0 0
        %954 = vmatpush1.bf16.msra.mxu0 0
        %955 = vmatprep.subr.bf16.mxu0 0
        %956 = vmatpush1.bf16.msra.mxu0 0
        %957 = vmatprep.subr.bf16.mxu0 0
        %958 = vmatpush1.bf16.msra.mxu0 0
        %959 = vmatprep.subr.bf16.mxu0 0
        %960 = vmatpush1.bf16.msra.mxu0 0
        %961 = vmatprep.subr.bf16.mxu0 0
        %962 = vmatpush1.bf16.msra.mxu0 0
        %963 = vmatprep.subr.bf16.mxu0 0
        %964 = vmatpush1.bf16.msra.mxu0 %v531
        %965 = vmatprep.subr.bf16.mxu0 0
        %966 = vmatpush1.bf16.msra.mxu0 %v530
        %967 = vmatprep.subr.bf16.mxu0 0
        %968 = vmatpush2.bf16.msra.mxu0 0
        %969 = vmatprep.subr.bf16.mxu0 0
        %970 = vmatpush2.bf16.msra.mxu0 0
        %971 = vmatprep.subr.bf16.mxu0 0
        %972 = vmatpush2.bf16.msra.mxu0 0
        %973 = vmatprep.subr.bf16.mxu0 0
        %974 = vmatpush2.bf16.msra.mxu0 0
        %975 = vmatprep.subr.bf16.mxu0 0
        %976 = vmatpush2.bf16.msra.mxu0 0
        %977 = vmatprep.subr.bf16.mxu0 0
        %978 = vmatpush2.bf16.msra.mxu0 0
        %979 = vmatprep.subr.bf16.mxu0 0
        %980 = vmatpush2.bf16.msra.mxu0 0
        %981 = vmatprep.subr.bf16.mxu0 0
        %982 = vmatpush2.bf16.msra.mxu0 0
        %983 = vmatprep.mubr.bf16.mxu0 0
        %984 = vmatmul.mubr.bf16.gmra.mxu0 %v949
        %v985 = vpop.f32.mrf.mxu0
        %v986 = vadd.f32 0.0, %v985
        %v987 = vpop.f32.mrf.mxu0
        %v988 = vpop.f32.mrf.mxu0
        %v989 = vadd.f32 0.0, %v988
        %v990 = vpop.f32.mrf.mxu0
        %991 = vdwg.mxu0
        %v992 = vsub.f32 %v986, 2.0
        %v993 = vsub.f32 %v989, 2.0
        %s994 = scalar_lea.vmem %s164, 128 [#allocation2]
        %995 = vst.msk [vmem:[%s994] sm:$0xff] %vm604, %v992
        %996 = vst.msk [vmem:[%s994 + $0x8] sm:$0xff] %vm604, %v993
        %997 = vmatprep.subr.bf16.mxu0 0
        %998 = vmatpush1.bf16.msra.mxu0 0
        %999 = vmatprep.subr.bf16.mxu0 0
        %1000 = vmatpush1.bf16.msra.mxu0 0
        %1001 = vmatprep.subr.bf16.mxu0 0
        %1002 = vmatpush1.bf16.msra.mxu0 0
        %1003 = vmatprep.subr.bf16.mxu0 0
        %1004 = vmatpush1.bf16.msra.mxu0 0
        %1005 = vmatprep.subr.bf16.mxu0 0
        %1006 = vmatpush1.bf16.msra.mxu0 0
        %1007 = vmatprep.subr.bf16.mxu0 0
        %1008 = vmatpush1.bf16.msra.mxu0 0
        %1009 = vmatprep.subr.bf16.mxu0 0
        %1010 = vmatpush1.bf16.msra.mxu0 %v537
        %1011 = vmatprep.subr.bf16.mxu0 0
        %1012 = vmatpush1.bf16.msra.mxu0 %v536
        %1013 = vmatprep.subr.bf16.mxu0 0
        %1014 = vmatpush2.bf16.msra.mxu0 0
        %1015 = vmatprep.subr.bf16.mxu0 0
        %1016 = vmatpush2.bf16.msra.mxu0 0
        %1017 = vmatprep.subr.bf16.mxu0 0
        %1018 = vmatpush2.bf16.msra.mxu0 0
        %1019 = vmatprep.subr.bf16.mxu0 0
        %1020 = vmatpush2.bf16.msra.mxu0 0
        %1021 = vmatprep.subr.bf16.mxu0 0
        %1022 = vmatpush2.bf16.msra.mxu0 0
        %1023 = vmatprep.subr.bf16.mxu0 0
        %1024 = vmatpush2.bf16.msra.mxu0 0
        %1025 = vmatprep.subr.bf16.mxu0 0
        %1026 = vmatpush2.bf16.msra.mxu0 0
        %1027 = vmatprep.subr.bf16.mxu0 0
        %1028 = vmatpush2.bf16.msra.mxu0 0
        %1029 = vmatprep.mubr.bf16.mxu0 0
        %1030 = vmatmul.mubr.bf16.gmra.mxu0 %v949
        %v1031 = vpop.f32.mrf.mxu0
        %v1032 = vadd.f32 0.0, %v1031
        %v1033 = vpop.f32.mrf.mxu0
        %v1034 = vpop.f32.mrf.mxu0
        %v1035 = vadd.f32 0.0, %v1034
        %v1036 = vpop.f32.mrf.mxu0
        %1037 = vdwg.mxu0
        %v1038 = vsub.f32 %v1032, 2.0
        %v1039 = vsub.f32 %v1035, 2.0
        %s1040 = scalar_lea.vmem %s164, 144 [#allocation2]
        %1041 = vst.msk [vmem:[%s1040] sm:$0xff] %vm604, %v1038
        %1042 = vst.msk [vmem:[%s1040 + $0x8] sm:$0xff] %vm604, %v1039
        %1043 = vmatprep.subr.bf16.mxu0 0
        %1044 = vmatpush1.bf16.msra.mxu0 0
        %1045 = vmatprep.subr.bf16.mxu0 0
        %1046 = vmatpush1.bf16.msra.mxu0 0
        %1047 = vmatprep.subr.bf16.mxu0 0
        %1048 = vmatpush1.bf16.msra.mxu0 0
        %1049 = vmatprep.subr.bf16.mxu0 0
        %1050 = vmatpush1.bf16.msra.mxu0 0
        %1051 = vmatprep.subr.bf16.mxu0 0
        %1052 = vmatpush1.bf16.msra.mxu0 0
        %1053 = vmatprep.subr.bf16.mxu0 0
        %1054 = vmatpush1.bf16.msra.mxu0 0
        %1055 = vmatprep.subr.bf16.mxu0 0
        %1056 = vmatpush1.bf16.msra.mxu0 %v543
        %1057 = vmatprep.subr.bf16.mxu0 0
        %1058 = vmatpush1.bf16.msra.mxu0 %v542
        %1059 = vmatprep.subr.bf16.mxu0 0
        %1060 = vmatpush2.bf16.msra.mxu0 0
        %1061 = vmatprep.subr.bf16.mxu0 0
        %1062 = vmatpush2.bf16.msra.mxu0 0
        %1063 = vmatprep.subr.bf16.mxu0 0
        %1064 = vmatpush2.bf16.msra.mxu0 0
        %1065 = vmatprep.subr.bf16.mxu0 0
        %1066 = vmatpush2.bf16.msra.mxu0 0
        %1067 = vmatprep.subr.bf16.mxu0 0
        %1068 = vmatpush2.bf16.msra.mxu0 0
        %1069 = vmatprep.subr.bf16.mxu0 0
        %1070 = vmatpush2.bf16.msra.mxu0 0
        %1071 = vmatprep.subr.bf16.mxu0 0
        %1072 = vmatpush2.bf16.msra.mxu0 0
        %1073 = vmatprep.subr.bf16.mxu0 0
        %1074 = vmatpush2.bf16.msra.mxu0 0
        %1075 = vmatprep.mubr.bf16.mxu0 0
        %1076 = vmatmul.mubr.bf16.gmra.mxu0 %v949
        %v1077 = vpop.f32.mrf.mxu0
        %v1078 = vadd.f32 0.0, %v1077
        %v1079 = vpop.f32.mrf.mxu0
        %v1080 = vpop.f32.mrf.mxu0
        %v1081 = vadd.f32 0.0, %v1080
        %v1082 = vpop.f32.mrf.mxu0
        %1083 = vdwg.mxu0
        %v1084 = vsub.f32 %v1078, 2.0
        %v1085 = vsub.f32 %v1081, 2.0
        %s1086 = scalar_lea.vmem %s164, 160 [#allocation2]
        %1087 = vst.msk [vmem:[%s1086] sm:$0xff] %vm604, %v1084
        %1088 = vst.msk [vmem:[%s1086 + $0x8] sm:$0xff] %vm604, %v1085
        %1089 = vmatprep.subr.bf16.mxu0 0
        %1090 = vmatpush1.bf16.msra.mxu0 0
        %1091 = vmatprep.subr.bf16.mxu0 0
        %1092 = vmatpush1.bf16.msra.mxu0 0
        %1093 = vmatprep.subr.bf16.mxu0 0
        %1094 = vmatpush1.bf16.msra.mxu0 0
        %1095 = vmatprep.subr.bf16.mxu0 0
        %1096 = vmatpush1.bf16.msra.mxu0 0
        %1097 = vmatprep.subr.bf16.mxu0 0
        %1098 = vmatpush1.bf16.msra.mxu0 0
        %1099 = vmatprep.subr.bf16.mxu0 0
        %1100 = vmatpush1.bf16.msra.mxu0 0
        %1101 = vmatprep.subr.bf16.mxu0 0
        %1102 = vmatpush1.bf16.msra.mxu0 %v549
        %1103 = vmatprep.subr.bf16.mxu0 0
        %1104 = vmatpush1.bf16.msra.mxu0 %v548
        %1105 = vmatprep.subr.bf16.mxu0 0
        %1106 = vmatpush2.bf16.msra.mxu0 0
        %1107 = vmatprep.subr.bf16.mxu0 0
        %1108 = vmatpush2.bf16.msra.mxu0 0
        %1109 = vmatprep.subr.bf16.mxu0 0
        %1110 = vmatpush2.bf16.msra.mxu0 0
        %1111 = vmatprep.subr.bf16.mxu0 0
        %1112 = vmatpush2.bf16.msra.mxu0 0
        %1113 = vmatprep.subr.bf16.mxu0 0
        %1114 = vmatpush2.bf16.msra.mxu0 0
        %1115 = vmatprep.subr.bf16.mxu0 0
        %1116 = vmatpush2.bf16.msra.mxu0 0
        %1117 = vmatprep.subr.bf16.mxu0 0
        %1118 = vmatpush2.bf16.msra.mxu0 0
        %1119 = vmatprep.subr.bf16.mxu0 0
        %1120 = vmatpush2.bf16.msra.mxu0 0
        %1121 = vmatprep.mubr.bf16.mxu0 0
        %1122 = vmatmul.mubr.bf16.gmra.mxu0 %v949
        %v1123 = vpop.f32.mrf.mxu0
        %v1124 = vadd.f32 0.0, %v1123
        %v1125 = vpop.f32.mrf.mxu0
        %v1126 = vpop.f32.mrf.mxu0
        %v1127 = vadd.f32 0.0, %v1126
        %v1128 = vpop.f32.mrf.mxu0
        %1129 = vdwg.mxu0
        %v1130 = vsub.f32 %v1124, 2.0
        %v1131 = vsub.f32 %v1127, 2.0
        %s1132 = scalar_lea.vmem %s164, 176 [#allocation2]
        %1133 = vst.msk [vmem:[%s1132] sm:$0xff] %vm604, %v1130
        %1134 = vst.msk [vmem:[%s1132 + $0x8] sm:$0xff] %vm604, %v1131
        %s1135 = sand.u32 %s93, 1
        %s1136 = scalar_lea.sflag [#allocation3], %s1135
        %s1137 = sand.u32 %s93, 1
        %s1138 = smul.addr %s1137, 192
        %s1139 = scalar_lea.vmem [#allocation2], %s1138
        // Predicated region
        $region33: #{tpu_custom_call.1} parent=31 // pred_check
          %p1140 = pneg %p103
        $region34: #{tpu_custom_call.1} parent=31 // pred_check_branch
          %1142 = sbr.rel (%p1140) target = $region36
        $region35: #{tpu_custom_call.1} parent=31 // pred_region
          #allocation5 [shape = 'u32[6]{0}', space=smem, size = 0x18, scoped, tag = 'DMA stride descriptor']
          %s1143 = smul.u32 4, %s17
          %s1145 = ssub.s32 3072, 3072
          %1146 = vsyncadd %s1136, %s1145
          %s1147 = smul.addr %s1143, 2
          %s1148 = smul.addr %s1147, 128
          %s1149 = scalar_lea.hbm %s3, %s1148
          %s1151 = sshll.u32 1, 14
          %s1152 = sxor.u32 4294967295, %s1151
          %s1155 = sshll.u32 7, 18
          %s1156 = sxor.u32 4294967295, %s1155
          %s1157 = sand.u32 0, %s1156
          %s1159 = sor.u32 %s1157, 0
          %s1160 = sshll.u32 %s1139, 4
          %s1161 = int_to_ptr.vmem [resolvable:$true] %s1160
          %1167 = sst [smem:[#allocation5]] 1024
          %s1168 = scalar_lea.smem [#allocation5], 1
          %1169 = sst [smem:[%s1168]] 2048
          %s1170 = scalar_lea.smem [#allocation5], 2
          %1171 = sst [smem:[%s1170]] 8
          %s1172 = scalar_lea.smem [#allocation5], 3
          %1173 = sst [smem:[%s1172]] 128
          %s1174 = scalar_lea.smem [#allocation5], 4
          %1175 = sst [smem:[%s1174]] 128
          %s1176 = scalar_lea.smem [#allocation5], 5
          %1177 = sst [smem:[%s1176]] 8
          %1179 = dma.general %s1161, 3072, %s1149, %s1136, 131072, [#allocation5], %s1159, 0
        $region36: #{tpu_custom_call.1} parent=31 // pred_fallthru
          _
      $region32: #{tpu_custom_call.1} parent=5 // pred_fallthru
        _
      %p1180 = scmp.le.s32.totalorder 2, %s12
      // Predicated region
      $region37: #{tpu_custom_call.1} parent=5 // pred_check
        %p1181 = pneg %p1180
      $region38: #{tpu_custom_call.1} parent=5 // pred_check_branch
        %1183 = sbr.rel (%p1181) target = $region40
      $region39: #{tpu_custom_call.1} parent=5 // pred_region
        %s1184 = ssub.s32 %s12, 2
        // Predicated region
        $region41: #{tpu_custom_call.1} parent=39 // pred_check
          %p1185 = pneg %p109
        $region42: #{tpu_custom_call.1} parent=39 // pred_check_branch
          %1187 = sbr.rel (%p1185) target = $region44
        $region43: #{tpu_custom_call.1} parent=39 // pred_region
          %s1188 = sand.u32 %s94, 1
          %s1189 = scalar_lea.sflag [#allocation3], %s1188
          %s1190 = sand.u32 %s94, 1
          %s1191 = smul.addr %s1190, 192
          %s1192 = scalar_lea.vmem [#allocation2], %s1191
          %1193 = dma.done %s1189, 3072
        $region44: #{tpu_custom_call.1} parent=39 // pred_fallthru
          _
      $region40: #{tpu_custom_call.1} parent=5 // pred_fallthru
        _
    $region6: #{tpu_custom_call.1} parent=1 // loop_footer
      %s16 = sadd.s32 1, %s12
    $region7: #{tpu_custom_call.1} parent=1 // loop_footer_branch
      %11 = sbr.rel target = $region3
    $region8: #{tpu_custom_call.1} parent=1 // loop_exit
      _
    %1194 = vsyncpa [#allocation3], 1
    %s1195 = scalar_lea.sflag [#allocation3], 1
    %1196 = vsyncpa %s1195, 1

</llo_original>
